<compile_context>
chip_gen: v7x
topology: tpu7x:2x2x1
jax: 0.10.0
libtpu: 0.0.40
codegen_flags: <defaults>
</compile_context>

<pallas_src>
import functools

import jax
import jax.numpy as jnp
from jax import lax
from jax.experimental import pallas as pl
from jax.experimental.pallas import tpu as pltpu


def _round_up(n, m):
    return ((n + m - 1) // m) * m


def _gru_core_kernel(x_ref, h0_ref, wx_ref, wh_ref, bx_ref, bhn_ref,
                     wo_ref, bo_ref, y_ref, hT_ref, gi_scratch, *, activation):
    S, Bp, Ip = x_ref.shape
    Hp = h0_ref.shape[1]
    G3 = 3 * Hp

    # --- Input-side gate pre-activations for ALL timesteps: one MXU matmul.
    # bx already contains b_ih (all gates) + b_hh (r, z gates), folded in at
    # wrapper time, so only the n-gate hidden bias remains inside the loop.
    x_all = x_ref[...].reshape(S * Bp, Ip)            # layout-free reshape
    gi_all = jnp.dot(x_all, wx_ref[...], preferred_element_type=jnp.float32)
    gi_all = gi_all + bx_ref[...]                     # added once, not per step
    gi_scratch[...] = gi_all.reshape(S, Bp, G3)

    wh = wh_ref[...]
    bhn = jnp.broadcast_to(bhn_ref[...], (Bp, Hp))    # hoisted out of the loop

    def step(t, h_prev):
        gi = gi_scratch[t]                            # (Bp, 3*Hp)
        gh = jnp.dot(h_prev, wh, preferred_element_type=jnp.float32)
        # Gate blocks are 128-lane aligned -> free slicing. Order (r, z, n).
        r = jax.nn.sigmoid(gi[:, 0:Hp] + gh[:, 0:Hp])
        z = jax.nn.sigmoid(gi[:, Hp:2 * Hp] + gh[:, Hp:2 * Hp])
        n = jnp.tanh(gi[:, 2 * Hp:G3] + r * (gh[:, 2 * Hp:G3] + bhn))
        # (1-z)*n + z*h == n + z*(h - n): one fewer VPU op on the critical path.
        return n + z * (h_prev - n)

    h0 = h0_ref[...]
    h1 = step(0, h0)                                  # == GRU output[:, 0, :]

    # Head: Linear(H -> O) + activation, applied to the first-timestep output.
    # Computed here so it overlaps with the remaining (sequential) timesteps.
    y = jnp.dot(h1, wo_ref[...], preferred_element_type=jnp.float32) + bo_ref[...]
    if activation == "tanh":
        y = jnp.tanh(y)
    else:  # leaky_relu, PyTorch default negative_slope = 0.01
        y = jnp.where(y > 0, y, 0.01 * y)
    y_ref[...] = y

    # Remaining timesteps, fully unrolled for scheduler visibility.
    hT = lax.fori_loop(1, S, step, h1, unroll=True)
    hT_ref[...] = hT


@functools.partial(jax.jit, static_argnames=("activation",))
def gru_core_forward(x_bsi, h0, params, *, activation="tanh"):
    """x_bsi: (B, S, I) batch-first like PyTorch.  h0: (1, B, H).

    Returns (y, hidden) with y: (B, O), hidden: (1, B, H)."""
    B, S, I = x_bsi.shape
    H = params["w_hh"].shape[1]
    O = params["w_out"].shape[0]

    Bp = _round_up(max(B, 8), 8)       # sublane-dense batch
    Ip = _round_up(I, 128)             # lane-dense input features
    Hp = _round_up(H, 128)             # lane-aligned gate blocks
    Op = _round_up(O, 128)             # lane-dense head output

    f32 = jnp.float32

    # Time-major, zero-padded input and initial hidden state.
    x_sbi = jnp.transpose(x_bsi, (1, 0, 2)).astype(f32)
    x_p = jnp.zeros((S, Bp, Ip), f32).at[:, :B, :I].set(x_sbi)
    h0_p = jnp.zeros((Bp, Hp), f32).at[:B, :H].set(h0[0].astype(f32))

    # Gate-blocked, vreg-aligned (transposed) weights: gate g occupies columns
    # [g*Hp, g*Hp+H); padded rows/cols are zero so padded lanes stay inert.
    w_ih = params["w_ih"].astype(f32)   # (3H, I)
    w_hh = params["w_hh"].astype(f32)   # (3H, H)
    b_ih = params["b_ih"].astype(f32)
    b_hh = params["b_hh"].astype(f32)
    wx = jnp.zeros((Ip, 3 * Hp), f32)
    wh = jnp.zeros((Hp, 3 * Hp), f32)
    bx = jnp.zeros((1, 3 * Hp), f32)
    for g in range(3):                  # PyTorch gate order (r, z, n)
        wx = wx.at[:I, g * Hp:g * Hp + H].set(w_ih[g * H:(g + 1) * H, :].T)
        wh = wh.at[:H, g * Hp:g * Hp + H].set(w_hh[g * H:(g + 1) * H, :].T)
        b_g = b_ih[g * H:(g + 1) * H]
        if g < 2:                       # fold b_hh for r, z into the input bias
            b_g = b_g + b_hh[g * H:(g + 1) * H]
        bx = bx.at[0, g * Hp:g * Hp + H].set(b_g)
    # n-gate hidden bias stays separate (it is scaled by r inside the cell).
    bhn = jnp.zeros((1, Hp), f32).at[0, :H].set(b_hh[2 * H:3 * H])

    wo = jnp.zeros((Hp, Op), f32).at[:H, :O].set(params["w_out"].astype(f32).T)
    bo = jnp.zeros((1, Op), f32).at[0, :O].set(params["b_out"].astype(f32))

    kernel = functools.partial(_gru_core_kernel, activation=activation)

    y_p, hT_p = pl.pallas_call(
        kernel,
        out_shape=(
            jax.ShapeDtypeStruct((Bp, Op), f32),
            jax.ShapeDtypeStruct((Bp, Hp), f32),
        ),
        grid_spec=pltpu.PrefetchScalarGridSpec(
            num_scalar_prefetch=0,
            grid=(1,),                              # whole sequence, one step
            in_specs=[
                pl.BlockSpec((S, Bp, Ip), lambda i: (0, 0, 0)),    # x (time-major)
                pl.BlockSpec((Bp, Hp), lambda i: (0, 0)),          # h0
                pl.BlockSpec((Ip, 3 * Hp), lambda i: (0, 0)),      # W_ih^T (gate-blocked)
                pl.BlockSpec((Hp, 3 * Hp), lambda i: (0, 0)),      # W_hh^T (gate-blocked)
                pl.BlockSpec((1, 3 * Hp), lambda i: (0, 0)),       # combined input bias
                pl.BlockSpec((1, Hp), lambda i: (0, 0)),           # b_hh (n gate)
                pl.BlockSpec((Hp, Op), lambda i: (0, 0)),          # W_out^T
                pl.BlockSpec((1, Op), lambda i: (0, 0)),           # b_out
            ],
            out_specs=[
                pl.BlockSpec((Bp, Op), lambda i: (0, 0)),          # y
                pl.BlockSpec((Bp, Hp), lambda i: (0, 0)),          # h_T
            ],
            scratch_shapes=[pltpu.VMEM((S, Bp, 3 * Hp), jnp.float32)],
        ),
        compiler_params=pltpu.CompilerParams(
            dimension_semantics=("arbitrary",),
        ),
    )(x_p, h0_p, wx, wh, bx, bhn, wo, bo)

    # Slice padded lanes/rows back to logical shapes.
    return y_p[:B, :O], hT_p[:B, :H][None, :, :]


def _reference_forward(x_bsi, h0, params, *, activation="tanh"):
    """Pure-JAX reference mirroring torch.nn.GRU + Linear + activation."""
    H = params["w_hh"].shape[1]
    w_ih, w_hh = params["w_ih"], params["w_hh"]
    b_ih, b_hh = params["b_ih"], params["b_hh"]
    h = h0[0]
    outs = []
    for t in range(x_bsi.shape[1]):
        x_t = x_bsi[:, t, :]
        gi = x_t @ w_ih.T + b_ih
        gh = h @ w_hh.T + b_hh
        i_r, i_z, i_n = gi[:, :H], gi[:, H:2 * H], gi[:, 2 * H:]
        h_r, h_z, h_n = gh[:, :H], gh[:, H:2 * H], gh[:, 2 * H:]
        r = jax.nn.sigmoid(i_r + h_r)
        z = jax.nn.sigmoid(i_z + h_z)
        n = jnp.tanh(i_n + r * h_n)
        h = (1.0 - z) * n + z * h
        outs.append(h)
    y = outs[0] @ params["w_out"].T + params["b_out"]
    y = jnp.tanh(y) if activation == "tanh" else jnp.where(y > 0, y, 0.01 * y)
    return y, h[None]


def make_params(key, input_size, hidden_size):
    """Deterministic parameter init matching torch.nn.GRU/Linear shapes."""
    k = jax.random.split(key, 6)
    s_gru = 1.0 / jnp.sqrt(hidden_size)
    s_lin = 1.0 / jnp.sqrt(hidden_size)
    return {
        "w_ih": jax.random.uniform(k[0], (3 * hidden_size, input_size),
                                   jnp.float32, -s_gru, s_gru),
        "w_hh": jax.random.uniform(k[1], (3 * hidden_size, hidden_size),
                                   jnp.float32, -s_gru, s_gru),
        "b_ih": jax.random.uniform(k[2], (3 * hidden_size,), jnp.float32, -s_gru, s_gru),
        "b_hh": jax.random.uniform(k[3], (3 * hidden_size,), jnp.float32, -s_gru, s_gru),
        "w_out": jax.random.uniform(k[4], (input_size, hidden_size),
                                    jnp.float32, -s_lin, s_lin),
        "b_out": jax.random.uniform(k[5], (input_size,), jnp.float32, -s_lin, s_lin),
    }


if __name__ == "__main__":
    # Small shapes consistent with the module: batch=2, seq=8, input=16, hidden=32.
    B, S, I, H = 2, 8, 16, 32

    root = jax.random.PRNGKey(0)
    kx, kp = jax.random.split(root)

    x = jax.random.normal(kx, (B, S, I), jnp.float32)
    h0 = jnp.zeros((1, B, H), jnp.float32)   # init_hidden (float32 here, not double)
    params = make_params(kp, I, H)

    for activation in ("tanh", "leaky_relu"):
        y, hT = gru_core_forward(x, h0, params, activation=activation)
        jax.block_until_ready((y, hT))

        y_ref, hT_ref = _reference_forward(x, h0, params, activation=activation)
        assert y.shape == (B, I) and hT.shape == (1, B, H), "shape mismatch"
        assert jnp.allclose(y, y_ref, atol=1e-4, rtol=1e-4), "output mismatch"
        assert jnp.allclose(hT, hT_ref, atol=1e-4, rtol=1e-4), "hidden mismatch"

    print("KERNEL_OK")
</pallas_src>

<mosaic_0001>
module attributes {stable_mosaic.version = 11 : i64} {
  func.func @_gru_core_kernel(%arg0: i32, %arg1: memref<8x8x128xf32, #tpu.memory_space<vmem>>, %arg2: memref<8x128xf32, #tpu.memory_space<vmem>>, %arg3: memref<128x384xf32, #tpu.memory_space<vmem>>, %arg4: memref<128x384xf32, #tpu.memory_space<vmem>>, %arg5: memref<1x384xf32, #tpu.memory_space<vmem>>, %arg6: memref<1x128xf32, #tpu.memory_space<vmem>>, %arg7: memref<128x128xf32, #tpu.memory_space<vmem>>, %arg8: memref<1x128xf32, #tpu.memory_space<vmem>>, %arg9: memref<8x128xf32, #tpu.memory_space<vmem>>, %arg10: memref<8x128xf32, #tpu.memory_space<vmem>>, %arg11: memref<8x8x384xf32, #tpu.memory_space<vmem>>) attributes {dimension_semantics = [#tpu.dimension_semantics<arbitrary>], iteration_bounds = array<i64: 1>, scalar_prefetch = 0 : i64, scratch_operands = 1 : i64, tpu.core_type = #tpu.core_type<tc>, window_params = [{pipeline_mode = #tpu.pipeline_mode<synchronous>, transform_indices = @transform_0, window_bounds = array<i64: 8, 8, 128>}, {pipeline_mode = #tpu.pipeline_mode<synchronous>, transform_indices = @transform_1, window_bounds = array<i64: 8, 128>}, {pipeline_mode = #tpu.pipeline_mode<synchronous>, transform_indices = @transform_2, window_bounds = array<i64: 128, 384>}, {pipeline_mode = #tpu.pipeline_mode<synchronous>, transform_indices = @transform_3, window_bounds = array<i64: 128, 384>}, {pipeline_mode = #tpu.pipeline_mode<synchronous>, transform_indices = @transform_4, window_bounds = array<i64: 1, 384>}, {pipeline_mode = #tpu.pipeline_mode<synchronous>, transform_indices = @transform_5, window_bounds = array<i64: 1, 128>}, {pipeline_mode = #tpu.pipeline_mode<synchronous>, transform_indices = @transform_6, window_bounds = array<i64: 128, 128>}, {pipeline_mode = #tpu.pipeline_mode<synchronous>, transform_indices = @transform_7, window_bounds = array<i64: 1, 128>}, {pipeline_mode = #tpu.pipeline_mode<synchronous>, transform_indices = @transform_8, window_bounds = array<i64: 8, 128>}, {pipeline_mode = #tpu.pipeline_mode<synchronous>, transform_indices = @transform_9, window_bounds = array<i64: 8, 128>}]} {
    %c0 = arith.constant 0 : index
    %c0_0 = arith.constant 0 : index
    %c0_1 = arith.constant 0 : index
    %0 = vector.load %arg1[%c0, %c0_0, %c0_1] : memref<8x8x128xf32, #tpu.memory_space<vmem>>, vector<8x8x128xf32>
    %1 = vector.shape_cast %0 : vector<8x8x128xf32> to vector<64x128xf32>
    %c0_2 = arith.constant 0 : index
    %c0_3 = arith.constant 0 : index
    %2 = vector.load %arg3[%c0_2, %c0_3] : memref<128x384xf32, #tpu.memory_space<vmem>>, vector<128x384xf32>
    %cst = arith.constant dense<0.000000e+00> : vector<64x384xf32>
    %3 = tpu.matmul %1, %2, %cst {dimension_numbers = #tpu.dot_dimension_numbers<[1], [0], [0], [1], [0, 0, 1, 1], [], []>} : vector<64x128xf32>, vector<128x384xf32>, vector<64x384xf32> -> vector<64x384xf32>
    %c0_4 = arith.constant 0 : index
    %c0_5 = arith.constant 0 : index
    %4 = vector.load %arg5[%c0_4, %c0_5] : memref<1x384xf32, #tpu.memory_space<vmem>>, vector<1x384xf32>
    %5 = vector.broadcast %4 : vector<1x384xf32> to vector<64x384xf32>
    %6 = arith.addf %3, %5 : vector<64x384xf32>
    %7 = vector.shape_cast %6 : vector<64x384xf32> to vector<8x8x384xf32>
    %c0_6 = arith.constant 0 : index
    %c0_7 = arith.constant 0 : index
    %c0_8 = arith.constant 0 : index
    %8 = vector.load %arg11[%c0_6, %c0_7, %c0_8] : memref<8x8x384xf32, #tpu.memory_space<vmem>>, vector<8x8x384xf32>
    tpu.vector_store %arg11[%c0_6, %c0_7, %c0_8], %7 {strides = array<i32>} : memref<8x8x384xf32, #tpu.memory_space<vmem>>, vector<8x8x384xf32>,
    %c0_9 = arith.constant 0 : index
    %c0_10 = arith.constant 0 : index
    %9 = vector.load %arg4[%c0_9, %c0_10] : memref<128x384xf32, #tpu.memory_space<vmem>>, vector<128x384xf32>
    %c0_11 = arith.constant 0 : index
    %c0_12 = arith.constant 0 : index
    %10 = vector.load %arg6[%c0_11, %c0_12] : memref<1x128xf32, #tpu.memory_space<vmem>>, vector<1x128xf32>
    %11 = vector.shape_cast %10 : vector<1x128xf32> to vector<1x128xf32>
    %12 = vector.broadcast %11 : vector<1x128xf32> to vector<8x128xf32>
    %c0_13 = arith.constant 0 : index
    %c0_14 = arith.constant 0 : index
    %13 = vector.load %arg2[%c0_13, %c0_14] : memref<8x128xf32, #tpu.memory_space<vmem>>, vector<8x128xf32>
    %c0_15 = arith.constant 0 : index
    %c0_16 = arith.constant 0 : index
    %c0_17 = arith.constant 0 : index
    %14 = vector.load %arg11[%c0_15, %c0_16, %c0_17] : memref<8x8x384xf32, #tpu.memory_space<vmem>>, vector<1x8x384xf32>
    %15 = vector.shape_cast %14 : vector<1x8x384xf32> to vector<8x384xf32>
    %cst_18 = arith.constant dense<0.000000e+00> : vector<8x384xf32>
    %16 = tpu.matmul %13, %9, %cst_18 {dimension_numbers = #tpu.dot_dimension_numbers<[1], [0], [0], [1], [0, 0, 1, 1], [], []>} : vector<8x128xf32>, vector<128x384xf32>, vector<8x384xf32> -> vector<8x384xf32>
    %17 = vector.extract_strided_slice %15 {offsets = [0, 0], sizes = [8, 128], strides = [1, 1]} : vector<8x384xf32> to vector<8x128xf32>
    %18 = vector.extract_strided_slice %16 {offsets = [0, 0], sizes = [8, 128], strides = [1, 1]} : vector<8x384xf32> to vector<8x128xf32>
    %19 = arith.addf %17, %18 : vector<8x128xf32>
    %20 = arith.negf %19 : vector<8x128xf32>
    %21 = math.exp %20 : vector<8x128xf32>
    %cst_19 = arith.constant 1.000000e+00 : f32
    %22 = vector.broadcast %cst_19 : f32 to vector<8x128xf32>
    %23 = arith.addf %22, %21 : vector<8x128xf32>
    %24 = arith.divf %22, %23 : vector<8x128xf32>
    %25 = vector.extract_strided_slice %15 {offsets = [0, 128], sizes = [8, 128], strides = [1, 1]} : vector<8x384xf32> to vector<8x128xf32>
    %26 = vector.extract_strided_slice %16 {offsets = [0, 128], sizes = [8, 128], strides = [1, 1]} : vector<8x384xf32> to vector<8x128xf32>
    %27 = arith.addf %25, %26 : vector<8x128xf32>
    %28 = arith.negf %27 : vector<8x128xf32>
    %29 = math.exp %28 : vector<8x128xf32>
    %cst_20 = arith.constant 1.000000e+00 : f32
    %30 = vector.broadcast %cst_20 : f32 to vector<8x128xf32>
    %31 = arith.addf %30, %29 : vector<8x128xf32>
    %32 = arith.divf %30, %31 : vector<8x128xf32>
    %33 = vector.extract_strided_slice %15 {offsets = [0, 256], sizes = [8, 128], strides = [1, 1]} : vector<8x384xf32> to vector<8x128xf32>
    %34 = vector.extract_strided_slice %16 {offsets = [0, 256], sizes = [8, 128], strides = [1, 1]} : vector<8x384xf32> to vector<8x128xf32>
    %35 = arith.addf %34, %12 : vector<8x128xf32>
    %36 = arith.mulf %24, %35 : vector<8x128xf32>
    %37 = arith.addf %33, %36 : vector<8x128xf32>
    %38 = math.tanh %37 : vector<8x128xf32>
    %39 = arith.subf %13, %38 : vector<8x128xf32>
    %40 = arith.mulf %32, %39 : vector<8x128xf32>
    %41 = arith.addf %38, %40 : vector<8x128xf32>
    %c0_21 = arith.constant 0 : index
    %c0_22 = arith.constant 0 : index
    %42 = vector.load %arg7[%c0_21, %c0_22] : memref<128x128xf32, #tpu.memory_space<vmem>>, vector<128x128xf32>
    %cst_23 = arith.constant dense<0.000000e+00> : vector<8x128xf32>
    %43 = tpu.matmul %41, %42, %cst_23 {dimension_numbers = #tpu.dot_dimension_numbers<[1], [0], [0], [1], [0, 0, 1, 1], [], []>} : vector<8x128xf32>, vector<128x128xf32>, vector<8x128xf32> -> vector<8x128xf32>
    %c0_24 = arith.constant 0 : index
    %c0_25 = arith.constant 0 : index
    %44 = vector.load %arg8[%c0_24, %c0_25] : memref<1x128xf32, #tpu.memory_space<vmem>>, vector<1x128xf32>
    %45 = vector.broadcast %44 : vector<1x128xf32> to vector<8x128xf32>
    %46 = arith.addf %43, %45 : vector<8x128xf32>
    %47 = math.tanh %46 : vector<8x128xf32>
    %c0_26 = arith.constant 0 : index
    %c0_27 = arith.constant 0 : index
    %48 = vector.load %arg9[%c0_26, %c0_27] : memref<8x128xf32, #tpu.memory_space<vmem>>, vector<8x128xf32>
    tpu.vector_store %arg9[%c0_26, %c0_27], %47 {strides = array<i32>} : memref<8x128xf32, #tpu.memory_space<vmem>>, vector<8x128xf32>,
    %c1_i32 = arith.constant 1 : i32
    %49 = arith.index_cast %c1_i32 : i32 to index
    %c0_28 = arith.constant 0 : index
    %c0_29 = arith.constant 0 : index
    %50 = vector.load %arg11[%49, %c0_28, %c0_29] : memref<8x8x384xf32, #tpu.memory_space<vmem>>, vector<1x8x384xf32>
    %51 = vector.shape_cast %50 : vector<1x8x384xf32> to vector<8x384xf32>
    %cst_30 = arith.constant dense<0.000000e+00> : vector<8x384xf32>
    %52 = tpu.matmul %41, %9, %cst_30 {dimension_numbers = #tpu.dot_dimension_numbers<[1], [0], [0], [1], [0, 0, 1, 1], [], []>} : vector<8x128xf32>, vector<128x384xf32>, vector<8x384xf32> -> vector<8x384xf32>
    %53 = vector.extract_strided_slice %51 {offsets = [0, 0], sizes = [8, 128], strides = [1, 1]} : vector<8x384xf32> to vector<8x128xf32>
    %54 = vector.extract_strided_slice %52 {offsets = [0, 0], sizes = [8, 128], strides = [1, 1]} : vector<8x384xf32> to vector<8x128xf32>
    %55 = arith.addf %53, %54 : vector<8x128xf32>
    %56 = arith.negf %55 : vector<8x128xf32>
    %57 = math.exp %56 : vector<8x128xf32>
    %cst_31 = arith.constant 1.000000e+00 : f32
    %58 = vector.broadcast %cst_31 : f32 to vector<8x128xf32>
    %59 = arith.addf %58, %57 : vector<8x128xf32>
    %60 = arith.divf %58, %59 : vector<8x128xf32>
    %61 = vector.extract_strided_slice %51 {offsets = [0, 128], sizes = [8, 128], strides = [1, 1]} : vector<8x384xf32> to vector<8x128xf32>
    %62 = vector.extract_strided_slice %52 {offsets = [0, 128], sizes = [8, 128], strides = [1, 1]} : vector<8x384xf32> to vector<8x128xf32>
    %63 = arith.addf %61, %62 : vector<8x128xf32>
    %64 = arith.negf %63 : vector<8x128xf32>
    %65 = math.exp %64 : vector<8x128xf32>
    %cst_32 = arith.constant 1.000000e+00 : f32
    %66 = vector.broadcast %cst_32 : f32 to vector<8x128xf32>
    %67 = arith.addf %66, %65 : vector<8x128xf32>
    %68 = arith.divf %66, %67 : vector<8x128xf32>
    %69 = vector.extract_strided_slice %51 {offsets = [0, 256], sizes = [8, 128], strides = [1, 1]} : vector<8x384xf32> to vector<8x128xf32>
    %70 = vector.extract_strided_slice %52 {offsets = [0, 256], sizes = [8, 128], strides = [1, 1]} : vector<8x384xf32> to vector<8x128xf32>
    %71 = arith.addf %70, %12 : vector<8x128xf32>
    %72 = arith.mulf %60, %71 : vector<8x128xf32>
    %73 = arith.addf %69, %72 : vector<8x128xf32>
    %74 = math.tanh %73 : vector<8x128xf32>
    %75 = arith.subf %41, %74 : vector<8x128xf32>
    %76 = arith.mulf %68, %75 : vector<8x128xf32>
    %77 = arith.addf %74, %76 : vector<8x128xf32>
    %c2_i32 = arith.constant 2 : i32
    %78 = arith.index_cast %c2_i32 : i32 to index
    %c0_33 = arith.constant 0 : index
    %c0_34 = arith.constant 0 : index
    %79 = vector.load %arg11[%78, %c0_33, %c0_34] : memref<8x8x384xf32, #tpu.memory_space<vmem>>, vector<1x8x384xf32>
    %80 = vector.shape_cast %79 : vector<1x8x384xf32> to vector<8x384xf32>
    %cst_35 = arith.constant dense<0.000000e+00> : vector<8x384xf32>
    %81 = tpu.matmul %77, %9, %cst_35 {dimension_numbers = #tpu.dot_dimension_numbers<[1], [0], [0], [1], [0, 0, 1, 1], [], []>} : vector<8x128xf32>, vector<128x384xf32>, vector<8x384xf32> -> vector<8x384xf32>
    %82 = vector.extract_strided_slice %80 {offsets = [0, 0], sizes = [8, 128], strides = [1, 1]} : vector<8x384xf32> to vector<8x128xf32>
    %83 = vector.extract_strided_slice %81 {offsets = [0, 0], sizes = [8, 128], strides = [1, 1]} : vector<8x384xf32> to vector<8x128xf32>
    %84 = arith.addf %82, %83 : vector<8x128xf32>
    %85 = arith.negf %84 : vector<8x128xf32>
    %86 = math.exp %85 : vector<8x128xf32>
    %cst_36 = arith.constant 1.000000e+00 : f32
    %87 = vector.broadcast %cst_36 : f32 to vector<8x128xf32>
    %88 = arith.addf %87, %86 : vector<8x128xf32>
    %89 = arith.divf %87, %88 : vector<8x128xf32>
    %90 = vector.extract_strided_slice %80 {offsets = [0, 128], sizes = [8, 128], strides = [1, 1]} : vector<8x384xf32> to vector<8x128xf32>
    %91 = vector.extract_strided_slice %81 {offsets = [0, 128], sizes = [8, 128], strides = [1, 1]} : vector<8x384xf32> to vector<8x128xf32>
    %92 = arith.addf %90, %91 : vector<8x128xf32>
    %93 = arith.negf %92 : vector<8x128xf32>
    %94 = math.exp %93 : vector<8x128xf32>
    %cst_37 = arith.constant 1.000000e+00 : f32
    %95 = vector.broadcast %cst_37 : f32 to vector<8x128xf32>
    %96 = arith.addf %95, %94 : vector<8x128xf32>
    %97 = arith.divf %95, %96 : vector<8x128xf32>
    %98 = vector.extract_strided_slice %80 {offsets = [0, 256], sizes = [8, 128], strides = [1, 1]} : vector<8x384xf32> to vector<8x128xf32>
    %99 = vector.extract_strided_slice %81 {offsets = [0, 256], sizes = [8, 128], strides = [1, 1]} : vector<8x384xf32> to vector<8x128xf32>
    %100 = arith.addf %99, %12 : vector<8x128xf32>
    %101 = arith.mulf %89, %100 : vector<8x128xf32>
    %102 = arith.addf %98, %101 : vector<8x128xf32>
    %103 = math.tanh %102 : vector<8x128xf32>
    %104 = arith.subf %77, %103 : vector<8x128xf32>
    %105 = arith.mulf %97, %104 : vector<8x128xf32>
    %106 = arith.addf %103, %105 : vector<8x128xf32>
    %c3_i32 = arith.constant 3 : i32
    %107 = arith.index_cast %c3_i32 : i32 to index
    %c0_38 = arith.constant 0 : index
    %c0_39 = arith.constant 0 : index
    %108 = vector.load %arg11[%107, %c0_38, %c0_39] : memref<8x8x384xf32, #tpu.memory_space<vmem>>, vector<1x8x384xf32>
    %109 = vector.shape_cast %108 : vector<1x8x384xf32> to vector<8x384xf32>
    %cst_40 = arith.constant dense<0.000000e+00> : vector<8x384xf32>
    %110 = tpu.matmul %106, %9, %cst_40 {dimension_numbers = #tpu.dot_dimension_numbers<[1], [0], [0], [1], [0, 0, 1, 1], [], []>} : vector<8x128xf32>, vector<128x384xf32>, vector<8x384xf32> -> vector<8x384xf32>
    %111 = vector.extract_strided_slice %109 {offsets = [0, 0], sizes = [8, 128], strides = [1, 1]} : vector<8x384xf32> to vector<8x128xf32>
    %112 = vector.extract_strided_slice %110 {offsets = [0, 0], sizes = [8, 128], strides = [1, 1]} : vector<8x384xf32> to vector<8x128xf32>
    %113 = arith.addf %111, %112 : vector<8x128xf32>
    %114 = arith.negf %113 : vector<8x128xf32>
    %115 = math.exp %114 : vector<8x128xf32>
    %cst_41 = arith.constant 1.000000e+00 : f32
    %116 = vector.broadcast %cst_41 : f32 to vector<8x128xf32>
    %117 = arith.addf %116, %115 : vector<8x128xf32>
    %118 = arith.divf %116, %117 : vector<8x128xf32>
    %119 = vector.extract_strided_slice %109 {offsets = [0, 128], sizes = [8, 128], strides = [1, 1]} : vector<8x384xf32> to vector<8x128xf32>
    %120 = vector.extract_strided_slice %110 {offsets = [0, 128], sizes = [8, 128], strides = [1, 1]} : vector<8x384xf32> to vector<8x128xf32>
    %121 = arith.addf %119, %120 : vector<8x128xf32>
    %122 = arith.negf %121 : vector<8x128xf32>
    %123 = math.exp %122 : vector<8x128xf32>
    %cst_42 = arith.constant 1.000000e+00 : f32
    %124 = vector.broadcast %cst_42 : f32 to vector<8x128xf32>
    %125 = arith.addf %124, %123 : vector<8x128xf32>
    %126 = arith.divf %124, %125 : vector<8x128xf32>
    %127 = vector.extract_strided_slice %109 {offsets = [0, 256], sizes = [8, 128], strides = [1, 1]} : vector<8x384xf32> to vector<8x128xf32>
    %128 = vector.extract_strided_slice %110 {offsets = [0, 256], sizes = [8, 128], strides = [1, 1]} : vector<8x384xf32> to vector<8x128xf32>
    %129 = arith.addf %128, %12 : vector<8x128xf32>
    %130 = arith.mulf %118, %129 : vector<8x128xf32>
    %131 = arith.addf %127, %130 : vector<8x128xf32>
    %132 = math.tanh %131 : vector<8x128xf32>
    %133 = arith.subf %106, %132 : vector<8x128xf32>
    %134 = arith.mulf %126, %133 : vector<8x128xf32>
    %135 = arith.addf %132, %134 : vector<8x128xf32>
    %c4_i32 = arith.constant 4 : i32
    %136 = arith.index_cast %c4_i32 : i32 to index
    %c0_43 = arith.constant 0 : index
    %c0_44 = arith.constant 0 : index
    %137 = vector.load %arg11[%136, %c0_43, %c0_44] : memref<8x8x384xf32, #tpu.memory_space<vmem>>, vector<1x8x384xf32>
    %138 = vector.shape_cast %137 : vector<1x8x384xf32> to vector<8x384xf32>
    %cst_45 = arith.constant dense<0.000000e+00> : vector<8x384xf32>
    %139 = tpu.matmul %135, %9, %cst_45 {dimension_numbers = #tpu.dot_dimension_numbers<[1], [0], [0], [1], [0, 0, 1, 1], [], []>} : vector<8x128xf32>, vector<128x384xf32>, vector<8x384xf32> -> vector<8x384xf32>
    %140 = vector.extract_strided_slice %138 {offsets = [0, 0], sizes = [8, 128], strides = [1, 1]} : vector<8x384xf32> to vector<8x128xf32>
    %141 = vector.extract_strided_slice %139 {offsets = [0, 0], sizes = [8, 128], strides = [1, 1]} : vector<8x384xf32> to vector<8x128xf32>
    %142 = arith.addf %140, %141 : vector<8x128xf32>
    %143 = arith.negf %142 : vector<8x128xf32>
    %144 = math.exp %143 : vector<8x128xf32>
    %cst_46 = arith.constant 1.000000e+00 : f32
    %145 = vector.broadcast %cst_46 : f32 to vector<8x128xf32>
    %146 = arith.addf %145, %144 : vector<8x128xf32>
    %147 = arith.divf %145, %146 : vector<8x128xf32>
    %148 = vector.extract_strided_slice %138 {offsets = [0, 128], sizes = [8, 128], strides = [1, 1]} : vector<8x384xf32> to vector<8x128xf32>
    %149 = vector.extract_strided_slice %139 {offsets = [0, 128], sizes = [8, 128], strides = [1, 1]} : vector<8x384xf32> to vector<8x128xf32>
    %150 = arith.addf %148, %149 : vector<8x128xf32>
    %151 = arith.negf %150 : vector<8x128xf32>
    %152 = math.exp %151 : vector<8x128xf32>
    %cst_47 = arith.constant 1.000000e+00 : f32
    %153 = vector.broadcast %cst_47 : f32 to vector<8x128xf32>
    %154 = arith.addf %153, %152 : vector<8x128xf32>
    %155 = arith.divf %153, %154 : vector<8x128xf32>
    %156 = vector.extract_strided_slice %138 {offsets = [0, 256], sizes = [8, 128], strides = [1, 1]} : vector<8x384xf32> to vector<8x128xf32>
    %157 = vector.extract_strided_slice %139 {offsets = [0, 256], sizes = [8, 128], strides = [1, 1]} : vector<8x384xf32> to vector<8x128xf32>
    %158 = arith.addf %157, %12 : vector<8x128xf32>
    %159 = arith.mulf %147, %158 : vector<8x128xf32>
    %160 = arith.addf %156, %159 : vector<8x128xf32>
    %161 = math.tanh %160 : vector<8x128xf32>
    %162 = arith.subf %135, %161 : vector<8x128xf32>
    %163 = arith.mulf %155, %162 : vector<8x128xf32>
    %164 = arith.addf %161, %163 : vector<8x128xf32>
    %c5_i32 = arith.constant 5 : i32
    %165 = arith.index_cast %c5_i32 : i32 to index
    %c0_48 = arith.constant 0 : index
    %c0_49 = arith.constant 0 : index
    %166 = vector.load %arg11[%165, %c0_48, %c0_49] : memref<8x8x384xf32, #tpu.memory_space<vmem>>, vector<1x8x384xf32>
    %167 = vector.shape_cast %166 : vector<1x8x384xf32> to vector<8x384xf32>
    %cst_50 = arith.constant dense<0.000000e+00> : vector<8x384xf32>
    %168 = tpu.matmul %164, %9, %cst_50 {dimension_numbers = #tpu.dot_dimension_numbers<[1], [0], [0], [1], [0, 0, 1, 1], [], []>} : vector<8x128xf32>, vector<128x384xf32>, vector<8x384xf32> -> vector<8x384xf32>
    %169 = vector.extract_strided_slice %167 {offsets = [0, 0], sizes = [8, 128], strides = [1, 1]} : vector<8x384xf32> to vector<8x128xf32>
    %170 = vector.extract_strided_slice %168 {offsets = [0, 0], sizes = [8, 128], strides = [1, 1]} : vector<8x384xf32> to vector<8x128xf32>
    %171 = arith.addf %169, %170 : vector<8x128xf32>
    %172 = arith.negf %171 : vector<8x128xf32>
    %173 = math.exp %172 : vector<8x128xf32>
    %cst_51 = arith.constant 1.000000e+00 : f32
    %174 = vector.broadcast %cst_51 : f32 to vector<8x128xf32>
    %175 = arith.addf %174, %173 : vector<8x128xf32>
    %176 = arith.divf %174, %175 : vector<8x128xf32>
    %177 = vector.extract_strided_slice %167 {offsets = [0, 128], sizes = [8, 128], strides = [1, 1]} : vector<8x384xf32> to vector<8x128xf32>
    %178 = vector.extract_strided_slice %168 {offsets = [0, 128], sizes = [8, 128], strides = [1, 1]} : vector<8x384xf32> to vector<8x128xf32>
    %179 = arith.addf %177, %178 : vector<8x128xf32>
    %180 = arith.negf %179 : vector<8x128xf32>
    %181 = math.exp %180 : vector<8x128xf32>
    %cst_52 = arith.constant 1.000000e+00 : f32
    %182 = vector.broadcast %cst_52 : f32 to vector<8x128xf32>
    %183 = arith.addf %182, %181 : vector<8x128xf32>
    %184 = arith.divf %182, %183 : vector<8x128xf32>
    %185 = vector.extract_strided_slice %167 {offsets = [0, 256], sizes = [8, 128], strides = [1, 1]} : vector<8x384xf32> to vector<8x128xf32>
    %186 = vector.extract_strided_slice %168 {offsets = [0, 256], sizes = [8, 128], strides = [1, 1]} : vector<8x384xf32> to vector<8x128xf32>
    %187 = arith.addf %186, %12 : vector<8x128xf32>
    %188 = arith.mulf %176, %187 : vector<8x128xf32>
    %189 = arith.addf %185, %188 : vector<8x128xf32>
    %190 = math.tanh %189 : vector<8x128xf32>
    %191 = arith.subf %164, %190 : vector<8x128xf32>
    %192 = arith.mulf %184, %191 : vector<8x128xf32>
    %193 = arith.addf %190, %192 : vector<8x128xf32>
    %c6_i32 = arith.constant 6 : i32
    %194 = arith.index_cast %c6_i32 : i32 to index
    %c0_53 = arith.constant 0 : index
    %c0_54 = arith.constant 0 : index
    %195 = vector.load %arg11[%194, %c0_53, %c0_54] : memref<8x8x384xf32, #tpu.memory_space<vmem>>, vector<1x8x384xf32>
    %196 = vector.shape_cast %195 : vector<1x8x384xf32> to vector<8x384xf32>
    %cst_55 = arith.constant dense<0.000000e+00> : vector<8x384xf32>
    %197 = tpu.matmul %193, %9, %cst_55 {dimension_numbers = #tpu.dot_dimension_numbers<[1], [0], [0], [1], [0, 0, 1, 1], [], []>} : vector<8x128xf32>, vector<128x384xf32>, vector<8x384xf32> -> vector<8x384xf32>
    %198 = vector.extract_strided_slice %196 {offsets = [0, 0], sizes = [8, 128], strides = [1, 1]} : vector<8x384xf32> to vector<8x128xf32>
    %199 = vector.extract_strided_slice %197 {offsets = [0, 0], sizes = [8, 128], strides = [1, 1]} : vector<8x384xf32> to vector<8x128xf32>
    %200 = arith.addf %198, %199 : vector<8x128xf32>
    %201 = arith.negf %200 : vector<8x128xf32>
    %202 = math.exp %201 : vector<8x128xf32>
    %cst_56 = arith.constant 1.000000e+00 : f32
    %203 = vector.broadcast %cst_56 : f32 to vector<8x128xf32>
    %204 = arith.addf %203, %202 : vector<8x128xf32>
    %205 = arith.divf %203, %204 : vector<8x128xf32>
    %206 = vector.extract_strided_slice %196 {offsets = [0, 128], sizes = [8, 128], strides = [1, 1]} : vector<8x384xf32> to vector<8x128xf32>
    %207 = vector.extract_strided_slice %197 {offsets = [0, 128], sizes = [8, 128], strides = [1, 1]} : vector<8x384xf32> to vector<8x128xf32>
    %208 = arith.addf %206, %207 : vector<8x128xf32>
    %209 = arith.negf %208 : vector<8x128xf32>
    %210 = math.exp %209 : vector<8x128xf32>
    %cst_57 = arith.constant 1.000000e+00 : f32
    %211 = vector.broadcast %cst_57 : f32 to vector<8x128xf32>
    %212 = arith.addf %211, %210 : vector<8x128xf32>
    %213 = arith.divf %211, %212 : vector<8x128xf32>
    %214 = vector.extract_strided_slice %196 {offsets = [0, 256], sizes = [8, 128], strides = [1, 1]} : vector<8x384xf32> to vector<8x128xf32>
    %215 = vector.extract_strided_slice %197 {offsets = [0, 256], sizes = [8, 128], strides = [1, 1]} : vector<8x384xf32> to vector<8x128xf32>
    %216 = arith.addf %215, %12 : vector<8x128xf32>
    %217 = arith.mulf %205, %216 : vector<8x128xf32>
    %218 = arith.addf %214, %217 : vector<8x128xf32>
    %219 = math.tanh %218 : vector<8x128xf32>
    %220 = arith.subf %193, %219 : vector<8x128xf32>
    %221 = arith.mulf %213, %220 : vector<8x128xf32>
    %222 = arith.addf %219, %221 : vector<8x128xf32>
    %c7_i32 = arith.constant 7 : i32
    %223 = arith.index_cast %c7_i32 : i32 to index
    %c0_58 = arith.constant 0 : index
    %c0_59 = arith.constant 0 : index
    %224 = vector.load %arg11[%223, %c0_58, %c0_59] : memref<8x8x384xf32, #tpu.memory_space<vmem>>, vector<1x8x384xf32>
    %225 = vector.shape_cast %224 : vector<1x8x384xf32> to vector<8x384xf32>
    %cst_60 = arith.constant dense<0.000000e+00> : vector<8x384xf32>
    %226 = tpu.matmul %222, %9, %cst_60 {dimension_numbers = #tpu.dot_dimension_numbers<[1], [0], [0], [1], [0, 0, 1, 1], [], []>} : vector<8x128xf32>, vector<128x384xf32>, vector<8x384xf32> -> vector<8x384xf32>
    %227 = vector.extract_strided_slice %225 {offsets = [0, 0], sizes = [8, 128], strides = [1, 1]} : vector<8x384xf32> to vector<8x128xf32>
    %228 = vector.extract_strided_slice %226 {offsets = [0, 0], sizes = [8, 128], strides = [1, 1]} : vector<8x384xf32> to vector<8x128xf32>
    %229 = arith.addf %227, %228 : vector<8x128xf32>
    %230 = arith.negf %229 : vector<8x128xf32>
    %231 = math.exp %230 : vector<8x128xf32>
    %cst_61 = arith.constant 1.000000e+00 : f32
    %232 = vector.broadcast %cst_61 : f32 to vector<8x128xf32>
    %233 = arith.addf %232, %231 : vector<8x128xf32>
    %234 = arith.divf %232, %233 : vector<8x128xf32>
    %235 = vector.extract_strided_slice %225 {offsets = [0, 128], sizes = [8, 128], strides = [1, 1]} : vector<8x384xf32> to vector<8x128xf32>
    %236 = vector.extract_strided_slice %226 {offsets = [0, 128], sizes = [8, 128], strides = [1, 1]} : vector<8x384xf32> to vector<8x128xf32>
    %237 = arith.addf %235, %236 : vector<8x128xf32>
    %238 = arith.negf %237 : vector<8x128xf32>
    %239 = math.exp %238 : vector<8x128xf32>
    %cst_62 = arith.constant 1.000000e+00 : f32
    %240 = vector.broadcast %cst_62 : f32 to vector<8x128xf32>
    %241 = arith.addf %240, %239 : vector<8x128xf32>
    %242 = arith.divf %240, %241 : vector<8x128xf32>
    %243 = vector.extract_strided_slice %225 {offsets = [0, 256], sizes = [8, 128], strides = [1, 1]} : vector<8x384xf32> to vector<8x128xf32>
    %244 = vector.extract_strided_slice %226 {offsets = [0, 256], sizes = [8, 128], strides = [1, 1]} : vector<8x384xf32> to vector<8x128xf32>
    %245 = arith.addf %244, %12 : vector<8x128xf32>
    %246 = arith.mulf %234, %245 : vector<8x128xf32>
    %247 = arith.addf %243, %246 : vector<8x128xf32>
    %248 = math.tanh %247 : vector<8x128xf32>
    %249 = arith.subf %222, %248 : vector<8x128xf32>
    %250 = arith.mulf %242, %249 : vector<8x128xf32>
    %251 = arith.addf %248, %250 : vector<8x128xf32>
    %c7_i32_63 = arith.constant 7 : i32
    %c0_64 = arith.constant 0 : index
    %c0_65 = arith.constant 0 : index
    %252 = vector.load %arg10[%c0_64, %c0_65] : memref<8x128xf32, #tpu.memory_space<vmem>>, vector<8x128xf32>
    tpu.vector_store %arg10[%c0_64, %c0_65], %251 {strides = array<i32>} : memref<8x128xf32, #tpu.memory_space<vmem>>, vector<8x128xf32>,
    return
  }
  func.func @transform_0(%arg0: i32) -> (i32, i32, i32) {
    %c0_i32 = arith.constant 0 : i32
    %c0_i32_0 = arith.constant 0 : i32
    %c0_i32_1 = arith.constant 0 : i32
    %c0_i32_2 = arith.constant 0 : i32
    return %c0_i32, %c0_i32_0, %c0_i32_1 : i32, i32, i32
  }
  func.func @transform_1(%arg0: i32) -> (i32, i32) {
    %c0_i32 = arith.constant 0 : i32
    %c0_i32_0 = arith.constant 0 : i32
    %c0_i32_1 = arith.constant 0 : i32
    return %c0_i32, %c0_i32_0 : i32, i32
  }
  func.func @transform_2(%arg0: i32) -> (i32, i32) {
    %c0_i32 = arith.constant 0 : i32
    %c0_i32_0 = arith.constant 0 : i32
    %c0_i32_1 = arith.constant 0 : i32
    return %c0_i32, %c0_i32_0 : i32, i32
  }
  func.func @transform_3(%arg0: i32) -> (i32, i32) {
    %c0_i32 = arith.constant 0 : i32
    %c0_i32_0 = arith.constant 0 : i32
    %c0_i32_1 = arith.constant 0 : i32
    return %c0_i32, %c0_i32_0 : i32, i32
  }
  func.func @transform_4(%arg0: i32) -> (i32, i32) {
    %c0_i32 = arith.constant 0 : i32
    %c0_i32_0 = arith.constant 0 : i32
    %c0_i32_1 = arith.constant 0 : i32
    return %c0_i32, %c0_i32_0 : i32, i32
  }
  func.func @transform_5(%arg0: i32) -> (i32, i32) {
    %c0_i32 = arith.constant 0 : i32
    %c0_i32_0 = arith.constant 0 : i32
    %c0_i32_1 = arith.constant 0 : i32
    return %c0_i32, %c0_i32_0 : i32, i32
  }
  func.func @transform_6(%arg0: i32) -> (i32, i32) {
    %c0_i32 = arith.constant 0 : i32
    %c0_i32_0 = arith.constant 0 : i32
    %c0_i32_1 = arith.constant 0 : i32
    return %c0_i32, %c0_i32_0 : i32, i32
  }
  func.func @transform_7(%arg0: i32) -> (i32, i32) {
    %c0_i32 = arith.constant 0 : i32
    %c0_i32_0 = arith.constant 0 : i32
    %c0_i32_1 = arith.constant 0 : i32
    return %c0_i32, %c0_i32_0 : i32, i32
  }
  func.func @transform_8(%arg0: i32) -> (i32, i32) {
    %c0_i32 = arith.constant 0 : i32
    %c0_i32_0 = arith.constant 0 : i32
    %c0_i32_1 = arith.constant 0 : i32
    return %c0_i32, %c0_i32_0 : i32, i32
  }
  func.func @transform_9(%arg0: i32) -> (i32, i32) {
    %c0_i32 = arith.constant 0 : i32
    %c0_i32_0 = arith.constant 0 : i32
    %c0_i32_1 = arith.constant 0 : i32
    return %c0_i32, %c0_i32_0 : i32, i32
  }
}

</mosaic_0001>

<llo_original>
// kernel: gru_core_forward.1
$region0: #{gru_core_forward.1}
  #allocation0 [shape = 'u32[]', space=smem, size = 0x4, offset = 0x4, fixed_abs, tag = 'smem constant byte address 0x4 - core index']
  #allocation1 [shape = 'u32[144,128]{1,0:T(1,128)}', space=vmem, size = 0x12000, scoped, tag = 'internal scratch']
  #allocation2 [shape = 'f32[8,8,384]{2,1,0:T(8,128)}', space=vmem, size = 0x18000, scoped, tag = 'scratch operand']
  %s0 = inlined_call_operand.vmem [shape: f32[8,8,128], index: 0, kind: input, shape index: {}]
  %s1 = inlined_call_operand.vmem [shape: f32[8,128], index: 1, kind: input, shape index: {}]
  %s2 = inlined_call_operand.vmem [shape: f32[128,384], index: 2, kind: input, shape index: {}]
  %s3 = inlined_call_operand.vmem [shape: f32[128,384], index: 3, kind: input, shape index: {}]
  %s4 = inlined_call_operand.vmem [shape: f32[1,384], index: 4, kind: input, shape index: {}]
  %s5 = inlined_call_operand.vmem [shape: f32[1,128], index: 5, kind: input, shape index: {}]
  %s6 = inlined_call_operand.vmem [shape: f32[128,128], index: 6, kind: input, shape index: {}]
  %s7 = inlined_call_operand.vmem [shape: f32[1,128], index: 7, kind: input, shape index: {}]
  %s8 = inlined_call_operand.vmem [shape: f32[8,128], index: 8, kind: output, shape index: {0}]
  %s9 = inlined_call_operand.vmem [shape: f32[8,128], index: 9, kind: output, shape index: {1}]
  %10 = xla_tuple %s8, %s9
  %s11 = sld [smem:[#allocation0]]
  $region50: #{gru_core_forward.1} parent=0
    _
  %s13 = ssub.s32 1, %s11
  %s14 = scalar_select 0, %s13, %s11
  // Predicated region
  $region2: #{gru_core_forward.1} parent=0 // pred_check
    _
  $region3: #{gru_core_forward.1} parent=0 // pred_check_branch
    %16 = sbr.rel (0) target = $region5
  $region4: #{gru_core_forward.1} parent=0 // pred_region
    _
  $region5: #{gru_core_forward.1} parent=0 // pred_fallthru
    _
  // Predicated region
  $region6: #{gru_core_forward.1} parent=0 // pred_check
    _
  $region7: #{gru_core_forward.1} parent=0 // pred_check_branch
    %18 = sbr.rel (0) target = $region9
  $region8: #{gru_core_forward.1} parent=0 // pred_region
    _
  $region9: #{gru_core_forward.1} parent=0 // pred_fallthru
    _
  // Predicated region
  $region10: #{gru_core_forward.1} parent=0 // pred_check
    _
  $region11: #{gru_core_forward.1} parent=0 // pred_check_branch
    %20 = sbr.rel (0) target = $region13
  $region12: #{gru_core_forward.1} parent=0 // pred_region
    _
  $region13: #{gru_core_forward.1} parent=0 // pred_fallthru
    _
  // Predicated region
  $region14: #{gru_core_forward.1} parent=0 // pred_check
    _
  $region15: #{gru_core_forward.1} parent=0 // pred_check_branch
    %22 = sbr.rel (0) target = $region17
  $region16: #{gru_core_forward.1} parent=0 // pred_region
    _
  $region17: #{gru_core_forward.1} parent=0 // pred_fallthru
    _
  // Predicated region
  $region18: #{gru_core_forward.1} parent=0 // pred_check
    _
  $region19: #{gru_core_forward.1} parent=0 // pred_check_branch
    %24 = sbr.rel (0) target = $region21
  $region20: #{gru_core_forward.1} parent=0 // pred_region
    _
  $region21: #{gru_core_forward.1} parent=0 // pred_fallthru
    _
  // Predicated region
  $region22: #{gru_core_forward.1} parent=0 // pred_check
    _
  $region23: #{gru_core_forward.1} parent=0 // pred_check_branch
    %26 = sbr.rel (0) target = $region25
  $region24: #{gru_core_forward.1} parent=0 // pred_region
    _
  $region25: #{gru_core_forward.1} parent=0 // pred_fallthru
    _
  // Predicated region
  $region26: #{gru_core_forward.1} parent=0 // pred_check
    _
  $region27: #{gru_core_forward.1} parent=0 // pred_check_branch
    %28 = sbr.rel (0) target = $region29
  $region28: #{gru_core_forward.1} parent=0 // pred_region
    _
  $region29: #{gru_core_forward.1} parent=0 // pred_fallthru
    _
  // Predicated region
  $region30: #{gru_core_forward.1} parent=0 // pred_check
    _
  $region31: #{gru_core_forward.1} parent=0 // pred_check_branch
    %30 = sbr.rel (0) target = $region33
  $region32: #{gru_core_forward.1} parent=0 // pred_region
    _
  $region33: #{gru_core_forward.1} parent=0 // pred_fallthru
    _
  %v31 = vld [vmem:[%s0] sm:$0xff]
  %v32 = vld [vmem:[%s0 + $0x8] sm:$0xff]
  %v33 = vld [vmem:[%s0 + $0x10] sm:$0xff]
  %v34 = vld [vmem:[%s0 + $0x18] sm:$0xff]
  %v35 = vld [vmem:[%s0 + $0x20] sm:$0xff]
  %v36 = vld [vmem:[%s0 + $0x28] sm:$0xff]
  %v37 = vld [vmem:[%s0 + $0x30] sm:$0xff]
  %v38 = vld [vmem:[%s0 + $0x38] sm:$0xff]
  %v39 = vld [vmem:[%s2] sm:$0xff]
  %v40 = vld [vmem:[%s2 + $0x8] sm:$0xff]
  %v41 = vld [vmem:[%s2 + $0x10] sm:$0xff]
  %v42 = vld [vmem:[%s2 + $0x18] sm:$0xff]
  %v43 = vld [vmem:[%s2 + $0x20] sm:$0xff]
  %v44 = vld [vmem:[%s2 + $0x28] sm:$0xff]
  %v45 = vld [vmem:[%s2 + $0x30] sm:$0xff]
  %v46 = vld [vmem:[%s2 + $0x38] sm:$0xff]
  %v47 = vld [vmem:[%s2 + $0x40] sm:$0xff]
  %v48 = vld [vmem:[%s2 + $0x48] sm:$0xff]
  %v49 = vld [vmem:[%s2 + $0x50] sm:$0xff]
  %v50 = vld [vmem:[%s2 + $0x58] sm:$0xff]
  %v51 = vld [vmem:[%s2 + $0x60] sm:$0xff]
  %v52 = vld [vmem:[%s2 + $0x68] sm:$0xff]
  %v53 = vld [vmem:[%s2 + $0x70] sm:$0xff]
  %v54 = vld [vmem:[%s2 + $0x78] sm:$0xff]
  %v55 = vld [vmem:[%s2 + $0x80] sm:$0xff]
  %v56 = vld [vmem:[%s2 + $0x88] sm:$0xff]
  %v57 = vld [vmem:[%s2 + $0x90] sm:$0xff]
  %v58 = vld [vmem:[%s2 + $0x98] sm:$0xff]
  %v59 = vld [vmem:[%s2 + $0xa0] sm:$0xff]
  %v60 = vld [vmem:[%s2 + $0xa8] sm:$0xff]
  %v61 = vld [vmem:[%s2 + $0xb0] sm:$0xff]
  %v62 = vld [vmem:[%s2 + $0xb8] sm:$0xff]
  %v63 = vld [vmem:[%s2 + $0xc0] sm:$0xff]
  %v64 = vld [vmem:[%s2 + $0xc8] sm:$0xff]
  %v65 = vld [vmem:[%s2 + $0xd0] sm:$0xff]
  %v66 = vld [vmem:[%s2 + $0xd8] sm:$0xff]
  %v67 = vld [vmem:[%s2 + $0xe0] sm:$0xff]
  %v68 = vld [vmem:[%s2 + $0xe8] sm:$0xff]
  %v69 = vld [vmem:[%s2 + $0xf0] sm:$0xff]
  %v70 = vld [vmem:[%s2 + $0xf8] sm:$0xff]
  %v71 = vld [vmem:[%s2 + $0x100] sm:$0xff]
  %v72 = vld [vmem:[%s2 + $0x108] sm:$0xff]
  %v73 = vld [vmem:[%s2 + $0x110] sm:$0xff]
  %v74 = vld [vmem:[%s2 + $0x118] sm:$0xff]
  %v75 = vld [vmem:[%s2 + $0x120] sm:$0xff]
  %v76 = vld [vmem:[%s2 + $0x128] sm:$0xff]
  %v77 = vld [vmem:[%s2 + $0x130] sm:$0xff]
  %v78 = vld [vmem:[%s2 + $0x138] sm:$0xff]
  %v79 = vld [vmem:[%s2 + $0x140] sm:$0xff]
  %v80 = vld [vmem:[%s2 + $0x148] sm:$0xff]
  %v81 = vld [vmem:[%s2 + $0x150] sm:$0xff]
  %v82 = vld [vmem:[%s2 + $0x158] sm:$0xff]
  %v83 = vld [vmem:[%s2 + $0x160] sm:$0xff]
  %v84 = vld [vmem:[%s2 + $0x168] sm:$0xff]
  %v85 = vld [vmem:[%s2 + $0x170] sm:$0xff]
  %v86 = vld [vmem:[%s2 + $0x178] sm:$0xff]
  %v87 = vld [vmem:[%s4] sm:$0x7]
  %v89 = vlaneseq
  %v90 = vshrl.u32 %v89, 7
  %v91 = vsub.s32 0, %v90
  %v92 = vrot.slane %v87, %v91
  %v93 = vlaneseq
  %v94 = vshrl.u32 %v93, 7
  %v95 = vsub.s32 1, %v94
  %v96 = vrot.slane %v87, %v95
  %v97 = vlaneseq
  %v98 = vshrl.u32 %v97, 7
  %v99 = vsub.s32 2, %v98
  %v100 = vrot.slane %v87, %v99
  %104 = vmatprep.subr.mxu0 %v40
  %105 = vmatpush1.msra.mxu0 %v39
  %106 = vmatprep.subr.mxu0 %v43
  %107 = vmatpush1.msra.mxu0 %v42
  %108 = vmatprep.subr.mxu0 %v46
  %109 = vmatpush1.msra.mxu0 %v45
  %110 = vmatprep.subr.mxu0 %v49
  %111 = vmatpush1.msra.mxu0 %v48
  %112 = vmatprep.subr.mxu0 %v52
  %113 = vmatpush1.msra.mxu0 %v51
  %114 = vmatprep.subr.mxu0 %v55
  %115 = vmatpush1.msra.mxu0 %v54
  %116 = vmatprep.subr.mxu0 %v58
  %117 = vmatpush1.msra.mxu0 %v57
  %118 = vmatprep.subr.mxu0 %v61
  %119 = vmatpush1.msra.mxu0 %v60
  %120 = vmatprep.subr.mxu0 %v64
  %121 = vmatpush1.msra.mxu0 %v63
  %122 = vmatprep.subr.mxu0 %v67
  %123 = vmatpush1.msra.mxu0 %v66
  %124 = vmatprep.subr.mxu0 %v70
  %125 = vmatpush1.msra.mxu0 %v69
  %126 = vmatprep.subr.mxu0 %v73
  %127 = vmatpush1.msra.mxu0 %v72
  %128 = vmatprep.subr.mxu0 %v76
  %129 = vmatpush1.msra.mxu0 %v75
  %130 = vmatprep.subr.mxu0 %v79
  %131 = vmatpush1.msra.mxu0 %v78
  %132 = vmatprep.subr.mxu0 %v82
  %133 = vmatpush1.msra.mxu0 %v81
  %134 = vmatprep.subr.mxu0 %v85
  %135 = vmatpush1.msra.mxu0 %v84
  %136 = vmatprep.subr.mxu0 0.0
  %137 = vmatpush1.msra.mxu0 0.0
  %138 = vmatprep.subr.mxu0 0.0
  %139 = vmatpush1.msra.mxu0 0.0
  %140 = vmatprep.subr.mxu0 0.0
  %141 = vmatpush1.msra.mxu0 0.0
  %142 = vmatprep.subr.mxu0 0.0
  %143 = vmatpush1.msra.mxu0 0.0
  %144 = vmatprep.subr.mxu0 0.0
  %145 = vmatpush1.msra.mxu0 0.0
  %146 = vmatprep.subr.mxu0 0.0
  %147 = vmatpush1.msra.mxu0 0.0
  %148 = vmatprep.subr.mxu0 0.0
  %149 = vmatpush1.msra.mxu0 0.0
  %150 = vmatprep.subr.mxu0 0.0
  %151 = vmatpush1.msra.mxu0 0.0
  %152 = vmatprep.subr.mxu0 0.0
  %153 = vmatpush1.msra.mxu0 0.0
  %154 = vmatprep.subr.mxu0 0.0
  %155 = vmatpush1.msra.mxu0 0.0
  %156 = vmatprep.subr.mxu0 0.0
  %157 = vmatpush1.msra.mxu0 0.0
  %158 = vmatprep.subr.mxu0 0.0
  %159 = vmatpush1.msra.mxu0 0.0
  %160 = vmatprep.subr.mxu0 0.0
  %161 = vmatpush1.msra.mxu0 0.0
  %162 = vmatprep.subr.mxu0 0.0
  %163 = vmatpush1.msra.mxu0 0.0
  %164 = vmatprep.subr.mxu0 0.0
  %165 = vmatpush1.msra.mxu0 0.0
  %166 = vmatprep.subr.mxu0 0.0
  %167 = vmatpush1.msra.mxu0 0.0
  %168 = vmatprep.mubr.f32.mxu0 0.0
  %169 = vmatmul.mubr.f32.gmra.mrb[0].mxu0 %v31
  %v170 = vpop.f32.mrb[0].mxu0
  %v171 = vadd.f32 %v92, %v170
  %v172 = vpop.f32.mrb[0].mxu0
  %v173 = vadd.f32 %v96, %v172
  %174 = vmatprep.mubr.f32.mxu0 0.0
  %175 = vmatmul.mubr.f32.gmra.mrb[0].mxu0 %v32
  %v176 = vpop.f32.mrb[0].mxu0
  %v177 = vadd.f32 %v92, %v176
  %v178 = vpop.f32.mrb[0].mxu0
  %v179 = vadd.f32 %v96, %v178
  %180 = vmatprep.mubr.f32.mxu0 0.0
  %181 = vmatmul.mubr.f32.gmra.mrb[0].mxu0 %v33
  %v182 = vpop.f32.mrb[0].mxu0
  %v183 = vadd.f32 %v92, %v182
  %v184 = vpop.f32.mrb[0].mxu0
  %v185 = vadd.f32 %v96, %v184
  %186 = vmatprep.mubr.f32.mxu0 0.0
  %187 = vmatmul.mubr.f32.gmra.mrb[0].mxu0 %v34
  %v188 = vpop.f32.mrb[0].mxu0
  %v189 = vadd.f32 %v92, %v188
  %v190 = vpop.f32.mrb[0].mxu0
  %v191 = vadd.f32 %v96, %v190
  %192 = vmatprep.mubr.f32.mxu0 0.0
  %193 = vmatmul.mubr.f32.gmra.mrb[0].mxu0 %v35
  %v194 = vpop.f32.mrb[0].mxu0
  %v195 = vadd.f32 %v92, %v194
  %v196 = vpop.f32.mrb[0].mxu0
  %v197 = vadd.f32 %v96, %v196
  %198 = vmatprep.mubr.f32.mxu0 0.0
  %199 = vmatmul.mubr.f32.gmra.mrb[0].mxu0 %v36
  %v200 = vpop.f32.mrb[0].mxu0
  %v201 = vadd.f32 %v92, %v200
  %v202 = vpop.f32.mrb[0].mxu0
  %v203 = vadd.f32 %v96, %v202
  %204 = vmatprep.mubr.f32.mxu0 0.0
  %205 = vmatmul.mubr.f32.gmra.mrb[0].mxu0 %v37
  %v206 = vpop.f32.mrb[0].mxu0
  %v207 = vadd.f32 %v92, %v206
  %v208 = vpop.f32.mrb[0].mxu0
  %v209 = vadd.f32 %v96, %v208
  %210 = vmatprep.mubr.f32.mxu0 0.0
  %211 = vmatmul.mubr.f32.gmra.mrb[0].mxu0 %v38
  %v212 = vpop.f32.mrb[0].mxu0
  %v213 = vadd.f32 %v92, %v212
  %v214 = vpop.f32.mrb[0].mxu0
  %v215 = vadd.f32 %v96, %v214
  %216 = vdwg.mxu0
  %217 = vmatprep.subr.mxu0 0.0
  %218 = vmatpush1.msra.mxu0 %v41
  %219 = vmatprep.subr.mxu0 0.0
  %220 = vmatpush1.msra.mxu0 %v44
  %221 = vmatprep.subr.mxu0 0.0
  %222 = vmatpush1.msra.mxu0 %v47
  %223 = vmatprep.subr.mxu0 0.0
  %224 = vmatpush1.msra.mxu0 %v50
  %225 = vmatprep.subr.mxu0 0.0
  %226 = vmatpush1.msra.mxu0 %v53
  %227 = vmatprep.subr.mxu0 0.0
  %228 = vmatpush1.msra.mxu0 %v56
  %229 = vmatprep.subr.mxu0 0.0
  %230 = vmatpush1.msra.mxu0 %v59
  %231 = vmatprep.subr.mxu0 0.0
  %232 = vmatpush1.msra.mxu0 %v62
  %233 = vmatprep.subr.mxu0 0.0
  %234 = vmatpush1.msra.mxu0 %v65
  %235 = vmatprep.subr.mxu0 0.0
  %236 = vmatpush1.msra.mxu0 %v68
  %237 = vmatprep.subr.mxu0 0.0
  %238 = vmatpush1.msra.mxu0 %v71
  %239 = vmatprep.subr.mxu0 0.0
  %240 = vmatpush1.msra.mxu0 %v74
  %241 = vmatprep.subr.mxu0 0.0
  %242 = vmatpush1.msra.mxu0 %v77
  %243 = vmatprep.subr.mxu0 0.0
  %244 = vmatpush1.msra.mxu0 %v80
  %245 = vmatprep.subr.mxu0 0.0
  %246 = vmatpush1.msra.mxu0 %v83
  %247 = vmatprep.subr.mxu0 0.0
  %248 = vmatpush1.msra.mxu0 %v86
  %249 = vmatprep.subr.mxu0 0.0
  %250 = vmatpush1.msra.mxu0 0.0
  %251 = vmatprep.subr.mxu0 0.0
  %252 = vmatpush1.msra.mxu0 0.0
  %253 = vmatprep.subr.mxu0 0.0
  %254 = vmatpush1.msra.mxu0 0.0
  %255 = vmatprep.subr.mxu0 0.0
  %256 = vmatpush1.msra.mxu0 0.0
  %257 = vmatprep.subr.mxu0 0.0
  %258 = vmatpush1.msra.mxu0 0.0
  %259 = vmatprep.subr.mxu0 0.0
  %260 = vmatpush1.msra.mxu0 0.0
  %261 = vmatprep.subr.mxu0 0.0
  %262 = vmatpush1.msra.mxu0 0.0
  %263 = vmatprep.subr.mxu0 0.0
  %264 = vmatpush1.msra.mxu0 0.0
  %265 = vmatprep.subr.mxu0 0.0
  %266 = vmatpush1.msra.mxu0 0.0
  %267 = vmatprep.subr.mxu0 0.0
  %268 = vmatpush1.msra.mxu0 0.0
  %269 = vmatprep.subr.mxu0 0.0
  %270 = vmatpush1.msra.mxu0 0.0
  %271 = vmatprep.subr.mxu0 0.0
  %272 = vmatpush1.msra.mxu0 0.0
  %273 = vmatprep.subr.mxu0 0.0
  %274 = vmatpush1.msra.mxu0 0.0
  %275 = vmatprep.subr.mxu0 0.0
  %276 = vmatpush1.msra.mxu0 0.0
  %277 = vmatprep.subr.mxu0 0.0
  %278 = vmatpush1.msra.mxu0 0.0
  %279 = vmatprep.subr.mxu0 0.0
  %280 = vmatpush1.msra.mxu0 0.0
  %281 = vmatprep.mubr.f32.mxu0 0.0
  %282 = vmatmul.mubr.f32.gmra.mrb[0].mxu0 %v31
  %v283 = vpop.f32.mrb[0].mxu0
  %v284 = vadd.f32 %v100, %v283
  %v285 = vpop.f32.mrb[0].mxu0
  %286 = vmatprep.mubr.f32.mxu0 0.0
  %287 = vmatmul.mubr.f32.gmra.mrb[0].mxu0 %v32
  %v288 = vpop.f32.mrb[0].mxu0
  %v289 = vadd.f32 %v100, %v288
  %v290 = vpop.f32.mrb[0].mxu0
  %291 = vmatprep.mubr.f32.mxu0 0.0
  %292 = vmatmul.mubr.f32.gmra.mrb[0].mxu0 %v33
  %v293 = vpop.f32.mrb[0].mxu0
  %v294 = vadd.f32 %v100, %v293
  %v295 = vpop.f32.mrb[0].mxu0
  %296 = vmatprep.mubr.f32.mxu0 0.0
  %297 = vmatmul.mubr.f32.gmra.mrb[0].mxu0 %v34
  %v298 = vpop.f32.mrb[0].mxu0
  %v299 = vadd.f32 %v100, %v298
  %v300 = vpop.f32.mrb[0].mxu0
  %301 = vmatprep.mubr.f32.mxu0 0.0
  %302 = vmatmul.mubr.f32.gmra.mrb[0].mxu0 %v35
  %v303 = vpop.f32.mrb[0].mxu0
  %v304 = vadd.f32 %v100, %v303
  %v305 = vpop.f32.mrb[0].mxu0
  %306 = vmatprep.mubr.f32.mxu0 0.0
  %307 = vmatmul.mubr.f32.gmra.mrb[0].mxu0 %v36
  %v308 = vpop.f32.mrb[0].mxu0
  %v309 = vadd.f32 %v100, %v308
  %v310 = vpop.f32.mrb[0].mxu0
  %311 = vmatprep.mubr.f32.mxu0 0.0
  %312 = vmatmul.mubr.f32.gmra.mrb[0].mxu0 %v37
  %v313 = vpop.f32.mrb[0].mxu0
  %v314 = vadd.f32 %v100, %v313
  %v315 = vpop.f32.mrb[0].mxu0
  %316 = vmatprep.mubr.f32.mxu0 0.0
  %317 = vmatmul.mubr.f32.gmra.mrb[0].mxu0 %v38
  %v318 = vpop.f32.mrb[0].mxu0
  %v319 = vadd.f32 %v100, %v318
  %v320 = vpop.f32.mrb[0].mxu0
  %321 = vdwg.mxu0
  %322 = vst [vmem:[#allocation2] sm:$0xff] %v171
  %323 = vst [vmem:[#allocation2 + $0x8] sm:$0xff] %v173
  %324 = vst [vmem:[#allocation2 + $0x10] sm:$0xff] %v284
  %325 = vst [vmem:[#allocation2 + $0x18] sm:$0xff] %v177
  %326 = vst [vmem:[#allocation2 + $0x20] sm:$0xff] %v179
  %327 = vst [vmem:[#allocation2 + $0x28] sm:$0xff] %v289
  %328 = vst [vmem:[#allocation2 + $0x30] sm:$0xff] %v183
  %329 = vst [vmem:[#allocation2 + $0x38] sm:$0xff] %v185
  %330 = vst [vmem:[#allocation2 + $0x40] sm:$0xff] %v294
  %331 = vst [vmem:[#allocation2 + $0x48] sm:$0xff] %v189
  %332 = vst [vmem:[#allocation2 + $0x50] sm:$0xff] %v191
  %333 = vst [vmem:[#allocation2 + $0x58] sm:$0xff] %v299
  %334 = vst [vmem:[#allocation2 + $0x60] sm:$0xff] %v195
  %335 = vst [vmem:[#allocation2 + $0x68] sm:$0xff] %v197
  %336 = vst [vmem:[#allocation2 + $0x70] sm:$0xff] %v304
  %337 = vst [vmem:[#allocation2 + $0x78] sm:$0xff] %v201
  %338 = vst [vmem:[#allocation2 + $0x80] sm:$0xff] %v203
  %339 = vst [vmem:[#allocation2 + $0x88] sm:$0xff] %v309
  %340 = vst [vmem:[#allocation2 + $0x90] sm:$0xff] %v207
  %341 = vst [vmem:[#allocation2 + $0x98] sm:$0xff] %v209
  %342 = vst [vmem:[#allocation2 + $0xa0] sm:$0xff] %v314
  %343 = vst [vmem:[#allocation2 + $0xa8] sm:$0xff] %v213
  %344 = vst [vmem:[#allocation2 + $0xb0] sm:$0xff] %v215
  %345 = vst [vmem:[#allocation2 + $0xb8] sm:$0xff] %v319
  %v346 = vld [vmem:[%s3] sm:$0xff]
  %v347 = vld [vmem:[%s3 + $0x8] sm:$0xff]
  %v348 = vld [vmem:[%s3 + $0x10] sm:$0xff]
  %v349 = vld [vmem:[%s3 + $0x18] sm:$0xff]
  %v350 = vld [vmem:[%s3 + $0x20] sm:$0xff]
  %v351 = vld [vmem:[%s3 + $0x28] sm:$0xff]
  %v352 = vld [vmem:[%s3 + $0x30] sm:$0xff]
  %v353 = vld [vmem:[%s3 + $0x38] sm:$0xff]
  %v354 = vld [vmem:[%s3 + $0x40] sm:$0xff]
  %v355 = vld [vmem:[%s3 + $0x48] sm:$0xff]
  %v356 = vld [vmem:[%s3 + $0x50] sm:$0xff]
  %v357 = vld [vmem:[%s3 + $0x58] sm:$0xff]
  %v358 = vld [vmem:[%s3 + $0x60] sm:$0xff]
  %v359 = vld [vmem:[%s3 + $0x68] sm:$0xff]
  %v360 = vld [vmem:[%s3 + $0x70] sm:$0xff]
  %v361 = vld [vmem:[%s3 + $0x78] sm:$0xff]
  %v362 = vld [vmem:[%s3 + $0x80] sm:$0xff]
  %v363 = vld [vmem:[%s3 + $0x88] sm:$0xff]
  %v364 = vld [vmem:[%s3 + $0x90] sm:$0xff]
  %v365 = vld [vmem:[%s3 + $0x98] sm:$0xff]
  %v366 = vld [vmem:[%s3 + $0xa0] sm:$0xff]
  %v367 = vld [vmem:[%s3 + $0xa8] sm:$0xff]
  %v368 = vld [vmem:[%s3 + $0xb0] sm:$0xff]
  %v369 = vld [vmem:[%s3 + $0xb8] sm:$0xff]
  %v370 = vld [vmem:[%s3 + $0xc0] sm:$0xff]
  %v371 = vld [vmem:[%s3 + $0xc8] sm:$0xff]
  %v372 = vld [vmem:[%s3 + $0xd0] sm:$0xff]
  %v373 = vld [vmem:[%s3 + $0xd8] sm:$0xff]
  %v374 = vld [vmem:[%s3 + $0xe0] sm:$0xff]
  %v375 = vld [vmem:[%s3 + $0xe8] sm:$0xff]
  %v376 = vld [vmem:[%s3 + $0xf0] sm:$0xff]
  %v377 = vld [vmem:[%s3 + $0xf8] sm:$0xff]
  %v378 = vld [vmem:[%s3 + $0x100] sm:$0xff]
  %v379 = vld [vmem:[%s3 + $0x108] sm:$0xff]
  %v380 = vld [vmem:[%s3 + $0x110] sm:$0xff]
  %v381 = vld [vmem:[%s3 + $0x118] sm:$0xff]
  %v382 = vld [vmem:[%s3 + $0x120] sm:$0xff]
  %v383 = vld [vmem:[%s3 + $0x128] sm:$0xff]
  %v384 = vld [vmem:[%s3 + $0x130] sm:$0xff]
  %v385 = vld [vmem:[%s3 + $0x138] sm:$0xff]
  %v386 = vld [vmem:[%s3 + $0x140] sm:$0xff]
  %v387 = vld [vmem:[%s3 + $0x148] sm:$0xff]
  %v388 = vld [vmem:[%s3 + $0x150] sm:$0xff]
  %v389 = vld [vmem:[%s3 + $0x158] sm:$0xff]
  %v390 = vld [vmem:[%s3 + $0x160] sm:$0xff]
  %v391 = vld [vmem:[%s3 + $0x168] sm:$0xff]
  %v392 = vld [vmem:[%s3 + $0x170] sm:$0xff]
  %v393 = vld [vmem:[%s3 + $0x178] sm:$0xff]
  %v394 = vld [vmem:[%s5] sm:$0x1]
  %v396 = vlaneseq
  %v397 = vshrl.u32 %v396, 7
  %v398 = vsub.s32 0, %v397
  %v399 = vrot.slane %v394, %v398
  %v401 = vld [vmem:[%s1] sm:$0xff]
  %v402 = vld [vmem:[#allocation2] sm:$0xff]
  %v403 = vld [vmem:[#allocation2 + $0x8] sm:$0xff]
  %v404 = vld [vmem:[#allocation2 + $0x10] sm:$0xff]
  %405 = vmatprep.subr.mxu0 %v347
  %406 = vmatpush1.msra.mxu0 %v346
  %407 = vmatprep.subr.mxu0 %v350
  %408 = vmatpush1.msra.mxu0 %v349
  %409 = vmatprep.subr.mxu0 %v353
  %410 = vmatpush1.msra.mxu0 %v352
  %411 = vmatprep.subr.mxu0 %v356
  %412 = vmatpush1.msra.mxu0 %v355
  %413 = vmatprep.subr.mxu0 %v359
  %414 = vmatpush1.msra.mxu0 %v358
  %415 = vmatprep.subr.mxu0 %v362
  %416 = vmatpush1.msra.mxu0 %v361
  %417 = vmatprep.subr.mxu0 %v365
  %418 = vmatpush1.msra.mxu0 %v364
  %419 = vmatprep.subr.mxu0 %v368
  %420 = vmatpush1.msra.mxu0 %v367
  %421 = vmatprep.subr.mxu0 %v371
  %422 = vmatpush1.msra.mxu0 %v370
  %423 = vmatprep.subr.mxu0 %v374
  %424 = vmatpush1.msra.mxu0 %v373
  %425 = vmatprep.subr.mxu0 %v377
  %426 = vmatpush1.msra.mxu0 %v376
  %427 = vmatprep.subr.mxu0 %v380
  %428 = vmatpush1.msra.mxu0 %v379
  %429 = vmatprep.subr.mxu0 %v383
  %430 = vmatpush1.msra.mxu0 %v382
  %431 = vmatprep.subr.mxu0 %v386
  %432 = vmatpush1.msra.mxu0 %v385
  %433 = vmatprep.subr.mxu0 %v389
  %434 = vmatpush1.msra.mxu0 %v388
  %435 = vmatprep.subr.mxu0 %v392
  %436 = vmatpush1.msra.mxu0 %v391
  %437 = vmatprep.subr.mxu0 0.0
  %438 = vmatpush1.msra.mxu0 0.0
  %439 = vmatprep.subr.mxu0 0.0
  %440 = vmatpush1.msra.mxu0 0.0
  %441 = vmatprep.subr.mxu0 0.0
  %442 = vmatpush1.msra.mxu0 0.0
  %443 = vmatprep.subr.mxu0 0.0
  %444 = vmatpush1.msra.mxu0 0.0
  %445 = vmatprep.subr.mxu0 0.0
  %446 = vmatpush1.msra.mxu0 0.0
  %447 = vmatprep.subr.mxu0 0.0
  %448 = vmatpush1.msra.mxu0 0.0
  %449 = vmatprep.subr.mxu0 0.0
  %450 = vmatpush1.msra.mxu0 0.0
  %451 = vmatprep.subr.mxu0 0.0
  %452 = vmatpush1.msra.mxu0 0.0
  %453 = vmatprep.subr.mxu0 0.0
  %454 = vmatpush1.msra.mxu0 0.0
  %455 = vmatprep.subr.mxu0 0.0
  %456 = vmatpush1.msra.mxu0 0.0
  %457 = vmatprep.subr.mxu0 0.0
  %458 = vmatpush1.msra.mxu0 0.0
  %459 = vmatprep.subr.mxu0 0.0
  %460 = vmatpush1.msra.mxu0 0.0
  %461 = vmatprep.subr.mxu0 0.0
  %462 = vmatpush1.msra.mxu0 0.0
  %463 = vmatprep.subr.mxu0 0.0
  %464 = vmatpush1.msra.mxu0 0.0
  %465 = vmatprep.subr.mxu0 0.0
  %466 = vmatpush1.msra.mxu0 0.0
  %467 = vmatprep.subr.mxu0 0.0
  %468 = vmatpush1.msra.mxu0 0.0
  %469 = vmatprep.mubr.f32.mxu0 0.0
  %470 = vmatmul.mubr.f32.gmra.mrb[0].mxu0 %v401
  %v471 = vpop.f32.mrb[0].mxu0
  %v472 = vadd.f32 0.0, %v471
  %v473 = vpop.f32.mrb[0].mxu0
  %v474 = vadd.f32 0.0, %v473
  %475 = vdwg.mxu0
  %476 = vmatprep.subr.mxu0 0.0
  %477 = vmatpush1.msra.mxu0 %v348
  %478 = vmatprep.subr.mxu0 0.0
  %479 = vmatpush1.msra.mxu0 %v351
  %480 = vmatprep.subr.mxu0 0.0
  %481 = vmatpush1.msra.mxu0 %v354
  %482 = vmatprep.subr.mxu0 0.0
  %483 = vmatpush1.msra.mxu0 %v357
  %484 = vmatprep.subr.mxu0 0.0
  %485 = vmatpush1.msra.mxu0 %v360
  %486 = vmatprep.subr.mxu0 0.0
  %487 = vmatpush1.msra.mxu0 %v363
  %488 = vmatprep.subr.mxu0 0.0
  %489 = vmatpush1.msra.mxu0 %v366
  %490 = vmatprep.subr.mxu0 0.0
  %491 = vmatpush1.msra.mxu0 %v369
  %492 = vmatprep.subr.mxu0 0.0
  %493 = vmatpush1.msra.mxu0 %v372
  %494 = vmatprep.subr.mxu0 0.0
  %495 = vmatpush1.msra.mxu0 %v375
  %496 = vmatprep.subr.mxu0 0.0
  %497 = vmatpush1.msra.mxu0 %v378
  %498 = vmatprep.subr.mxu0 0.0
  %499 = vmatpush1.msra.mxu0 %v381
  %500 = vmatprep.subr.mxu0 0.0
  %501 = vmatpush1.msra.mxu0 %v384
  %502 = vmatprep.subr.mxu0 0.0
  %503 = vmatpush1.msra.mxu0 %v387
  %504 = vmatprep.subr.mxu0 0.0
  %505 = vmatpush1.msra.mxu0 %v390
  %506 = vmatprep.subr.mxu0 0.0
  %507 = vmatpush1.msra.mxu0 %v393
  %508 = vmatprep.subr.mxu0 0.0
  %509 = vmatpush1.msra.mxu0 0.0
  %510 = vmatprep.subr.mxu0 0.0
  %511 = vmatpush1.msra.mxu0 0.0
  %512 = vmatprep.subr.mxu0 0.0
  %513 = vmatpush1.msra.mxu0 0.0
  %514 = vmatprep.subr.mxu0 0.0
  %515 = vmatpush1.msra.mxu0 0.0
  %516 = vmatprep.subr.mxu0 0.0
  %517 = vmatpush1.msra.mxu0 0.0
  %518 = vmatprep.subr.mxu0 0.0
  %519 = vmatpush1.msra.mxu0 0.0
  %520 = vmatprep.subr.mxu0 0.0
  %521 = vmatpush1.msra.mxu0 0.0
  %522 = vmatprep.subr.mxu0 0.0
  %523 = vmatpush1.msra.mxu0 0.0
  %524 = vmatprep.subr.mxu0 0.0
  %525 = vmatpush1.msra.mxu0 0.0
  %526 = vmatprep.subr.mxu0 0.0
  %527 = vmatpush1.msra.mxu0 0.0
  %528 = vmatprep.subr.mxu0 0.0
  %529 = vmatpush1.msra.mxu0 0.0
  %530 = vmatprep.subr.mxu0 0.0
  %531 = vmatpush1.msra.mxu0 0.0
  %532 = vmatprep.subr.mxu0 0.0
  %533 = vmatpush1.msra.mxu0 0.0
  %534 = vmatprep.subr.mxu0 0.0
  %535 = vmatpush1.msra.mxu0 0.0
  %536 = vmatprep.subr.mxu0 0.0
  %537 = vmatpush1.msra.mxu0 0.0
  %538 = vmatprep.subr.mxu0 0.0
  %539 = vmatpush1.msra.mxu0 0.0
  %540 = vmatprep.mubr.f32.mxu0 0.0
  %541 = vmatmul.mubr.f32.gmra.mrb[0].mxu0 %v401
  %v542 = vpop.f32.mrb[0].mxu0
  %v543 = vadd.f32 0.0, %v542
  %v544 = vpop.f32.mrb[0].mxu0
  %545 = vdwg.mxu0
  %v546 = vadd.f32 %v402, %v472
  %v547 = vxor.u32 %v546, 2147483648
  %v548 = vmul.f32 %v547, 1.442695
  %v549 = vpow.pop %v548
  %v550 = vadd.f32 %v549, 1.0
  %v551 = vrcp.pop %v550
  %v552 = vmul.f32 1.0, %v551
  %v553 = vadd.f32 %v403, %v474
  %v554 = vxor.u32 %v553, 2147483648
  %v555 = vmul.f32 %v554, 1.442695
  %v556 = vpow.pop %v555
  %v557 = vadd.f32 %v556, 1.0
  %v558 = vrcp.pop %v557
  %v559 = vmul.f32 1.0, %v558
  %v560 = vadd.f32 %v543, %v399
  %v561 = vmul.f32 %v552, %v560
  %v562 = vadd.f32 %v404, %v561
  %v563 = vtanh.pop %v562
  %v564 = vsub.f32 %v401, %v563
  %v565 = vmul.f32 %v559, %v564
  %v566 = vadd.f32 %v563, %v565
  %v567 = vld [vmem:[%s6] sm:$0xff]
  %v568 = vld [vmem:[%s6 + $0x8] sm:$0xff]
  %v569 = vld [vmem:[%s6 + $0x10] sm:$0xff]
  %v570 = vld [vmem:[%s6 + $0x18] sm:$0xff]
  %v571 = vld [vmem:[%s6 + $0x20] sm:$0xff]
  %v572 = vld [vmem:[%s6 + $0x28] sm:$0xff]
  %v573 = vld [vmem:[%s6 + $0x30] sm:$0xff]
  %v574 = vld [vmem:[%s6 + $0x38] sm:$0xff]
  %v575 = vld [vmem:[%s6 + $0x40] sm:$0xff]
  %v576 = vld [vmem:[%s6 + $0x48] sm:$0xff]
  %v577 = vld [vmem:[%s6 + $0x50] sm:$0xff]
  %v578 = vld [vmem:[%s6 + $0x58] sm:$0xff]
  %v579 = vld [vmem:[%s6 + $0x60] sm:$0xff]
  %v580 = vld [vmem:[%s6 + $0x68] sm:$0xff]
  %v581 = vld [vmem:[%s6 + $0x70] sm:$0xff]
  %v582 = vld [vmem:[%s6 + $0x78] sm:$0xff]
  %v583 = vld [vmem:[%s7] sm:$0x1]
  %v585 = vlaneseq
  %v586 = vshrl.u32 %v585, 7
  %v587 = vsub.s32 0, %v586
  %v588 = vrot.slane %v583, %v587
  %590 = vmatprep.subr.mxu0 0.0
  %591 = vmatpush1.msra.mxu0 %v567
  %592 = vmatprep.subr.mxu0 0.0
  %593 = vmatpush1.msra.mxu0 %v568
  %594 = vmatprep.subr.mxu0 0.0
  %595 = vmatpush1.msra.mxu0 %v569
  %596 = vmatprep.subr.mxu0 0.0
  %597 = vmatpush1.msra.mxu0 %v570
  %598 = vmatprep.subr.mxu0 0.0
  %599 = vmatpush1.msra.mxu0 %v571
  %600 = vmatprep.subr.mxu0 0.0
  %601 = vmatpush1.msra.mxu0 %v572
  %602 = vmatprep.subr.mxu0 0.0
  %603 = vmatpush1.msra.mxu0 %v573
  %604 = vmatprep.subr.mxu0 0.0
  %605 = vmatpush1.msra.mxu0 %v574
  %606 = vmatprep.subr.mxu0 0.0
  %607 = vmatpush1.msra.mxu0 %v575
  %608 = vmatprep.subr.mxu0 0.0
  %609 = vmatpush1.msra.mxu0 %v576
  %610 = vmatprep.subr.mxu0 0.0
  %611 = vmatpush1.msra.mxu0 %v577
  %612 = vmatprep.subr.mxu0 0.0
  %613 = vmatpush1.msra.mxu0 %v578
  %614 = vmatprep.subr.mxu0 0.0
  %615 = vmatpush1.msra.mxu0 %v579
  %616 = vmatprep.subr.mxu0 0.0
  %617 = vmatpush1.msra.mxu0 %v580
  %618 = vmatprep.subr.mxu0 0.0
  %619 = vmatpush1.msra.mxu0 %v581
  %620 = vmatprep.subr.mxu0 0.0
  %621 = vmatpush1.msra.mxu0 %v582
  %622 = vmatprep.subr.mxu0 0.0
  %623 = vmatpush1.msra.mxu0 0.0
  %624 = vmatprep.subr.mxu0 0.0
  %625 = vmatpush1.msra.mxu0 0.0
  %626 = vmatprep.subr.mxu0 0.0
  %627 = vmatpush1.msra.mxu0 0.0
  %628 = vmatprep.subr.mxu0 0.0
  %629 = vmatpush1.msra.mxu0 0.0
  %630 = vmatprep.subr.mxu0 0.0
  %631 = vmatpush1.msra.mxu0 0.0
  %632 = vmatprep.subr.mxu0 0.0
  %633 = vmatpush1.msra.mxu0 0.0
  %634 = vmatprep.subr.mxu0 0.0
  %635 = vmatpush1.msra.mxu0 0.0
  %636 = vmatprep.subr.mxu0 0.0
  %637 = vmatpush1.msra.mxu0 0.0
  %638 = vmatprep.subr.mxu0 0.0
  %639 = vmatpush1.msra.mxu0 0.0
  %640 = vmatprep.subr.mxu0 0.0
  %641 = vmatpush1.msra.mxu0 0.0
  %642 = vmatprep.subr.mxu0 0.0
  %643 = vmatpush1.msra.mxu0 0.0
  %644 = vmatprep.subr.mxu0 0.0
  %645 = vmatpush1.msra.mxu0 0.0
  %646 = vmatprep.subr.mxu0 0.0
  %647 = vmatpush1.msra.mxu0 0.0
  %648 = vmatprep.subr.mxu0 0.0
  %649 = vmatpush1.msra.mxu0 0.0
  %650 = vmatprep.subr.mxu0 0.0
  %651 = vmatpush1.msra.mxu0 0.0
  %652 = vmatprep.subr.mxu0 0.0
  %653 = vmatpush1.msra.mxu0 0.0
  %654 = vmatprep.mubr.f32.mxu0 0.0
  %655 = vmatmul.mubr.f32.gmra.mrb[0].mxu0 %v566
  %v656 = vpop.f32.mrb[0].mxu0
  %v657 = vadd.f32 %v588, %v656
  %v658 = vpop.f32.mrb[0].mxu0
  %659 = vdwg.mxu0
  %v660 = vtanh.pop %v657
  %661 = vst [vmem:[%s8] sm:$0xff] %v660
  %s662 = scalar_lea.vmem [#allocation2], 24
  %v663 = vld [vmem:[%s662] sm:$0xff]
  %v664 = vld [vmem:[%s662 + $0x8] sm:$0xff]
  %v665 = vld [vmem:[%s662 + $0x10] sm:$0xff]
  %666 = vmatprep.subr.mxu0 %v347
  %667 = vmatpush1.msra.mxu0 %v346
  %668 = vmatprep.subr.mxu0 %v350
  %669 = vmatpush1.msra.mxu0 %v349
  %670 = vmatprep.subr.mxu0 %v353
  %671 = vmatpush1.msra.mxu0 %v352
  %672 = vmatprep.subr.mxu0 %v356
  %673 = vmatpush1.msra.mxu0 %v355
  %674 = vmatprep.subr.mxu0 %v359
  %675 = vmatpush1.msra.mxu0 %v358
  %676 = vmatprep.subr.mxu0 %v362
  %677 = vmatpush1.msra.mxu0 %v361
  %678 = vmatprep.subr.mxu0 %v365
  %679 = vmatpush1.msra.mxu0 %v364
  %680 = vmatprep.subr.mxu0 %v368
  %681 = vmatpush1.msra.mxu0 %v367
  %682 = vmatprep.subr.mxu0 %v371
  %683 = vmatpush1.msra.mxu0 %v370
  %684 = vmatprep.subr.mxu0 %v374
  %685 = vmatpush1.msra.mxu0 %v373
  %686 = vmatprep.subr.mxu0 %v377
  %687 = vmatpush1.msra.mxu0 %v376
  %688 = vmatprep.subr.mxu0 %v380
  %689 = vmatpush1.msra.mxu0 %v379
  %690 = vmatprep.subr.mxu0 %v383
  %691 = vmatpush1.msra.mxu0 %v382
  %692 = vmatprep.subr.mxu0 %v386
  %693 = vmatpush1.msra.mxu0 %v385
  %694 = vmatprep.subr.mxu0 %v389
  %695 = vmatpush1.msra.mxu0 %v388
  %696 = vmatprep.subr.mxu0 %v392
  %697 = vmatpush1.msra.mxu0 %v391
  %698 = vmatprep.subr.mxu0 0.0
  %699 = vmatpush1.msra.mxu0 0.0
  %700 = vmatprep.subr.mxu0 0.0
  %701 = vmatpush1.msra.mxu0 0.0
  %702 = vmatprep.subr.mxu0 0.0
  %703 = vmatpush1.msra.mxu0 0.0
  %704 = vmatprep.subr.mxu0 0.0
  %705 = vmatpush1.msra.mxu0 0.0
  %706 = vmatprep.subr.mxu0 0.0
  %707 = vmatpush1.msra.mxu0 0.0
  %708 = vmatprep.subr.mxu0 0.0
  %709 = vmatpush1.msra.mxu0 0.0
  %710 = vmatprep.subr.mxu0 0.0
  %711 = vmatpush1.msra.mxu0 0.0
  %712 = vmatprep.subr.mxu0 0.0
  %713 = vmatpush1.msra.mxu0 0.0
  %714 = vmatprep.subr.mxu0 0.0
  %715 = vmatpush1.msra.mxu0 0.0
  %716 = vmatprep.subr.mxu0 0.0
  %717 = vmatpush1.msra.mxu0 0.0
  %718 = vmatprep.subr.mxu0 0.0
  %719 = vmatpush1.msra.mxu0 0.0
  %720 = vmatprep.subr.mxu0 0.0
  %721 = vmatpush1.msra.mxu0 0.0
  %722 = vmatprep.subr.mxu0 0.0
  %723 = vmatpush1.msra.mxu0 0.0
  %724 = vmatprep.subr.mxu0 0.0
  %725 = vmatpush1.msra.mxu0 0.0
  %726 = vmatprep.subr.mxu0 0.0
  %727 = vmatpush1.msra.mxu0 0.0
  %728 = vmatprep.subr.mxu0 0.0
  %729 = vmatpush1.msra.mxu0 0.0
  %730 = vmatprep.mubr.f32.mxu0 0.0
  %731 = vmatmul.mubr.f32.gmra.mrb[0].mxu0 %v566
  %v732 = vpop.f32.mrb[0].mxu0
  %v733 = vadd.f32 0.0, %v732
  %v734 = vpop.f32.mrb[0].mxu0
  %v735 = vadd.f32 0.0, %v734
  %736 = vdwg.mxu0
  %737 = vmatprep.subr.mxu0 0.0
  %738 = vmatpush1.msra.mxu0 %v348
  %739 = vmatprep.subr.mxu0 0.0
  %740 = vmatpush1.msra.mxu0 %v351
  %741 = vmatprep.subr.mxu0 0.0
  %742 = vmatpush1.msra.mxu0 %v354
  %743 = vmatprep.subr.mxu0 0.0
  %744 = vmatpush1.msra.mxu0 %v357
  %745 = vmatprep.subr.mxu0 0.0
  %746 = vmatpush1.msra.mxu0 %v360
  %747 = vmatprep.subr.mxu0 0.0
  %748 = vmatpush1.msra.mxu0 %v363
  %749 = vmatprep.subr.mxu0 0.0
  %750 = vmatpush1.msra.mxu0 %v366
  %751 = vmatprep.subr.mxu0 0.0
  %752 = vmatpush1.msra.mxu0 %v369
  %753 = vmatprep.subr.mxu0 0.0
  %754 = vmatpush1.msra.mxu0 %v372
  %755 = vmatprep.subr.mxu0 0.0
  %756 = vmatpush1.msra.mxu0 %v375
  %757 = vmatprep.subr.mxu0 0.0
  %758 = vmatpush1.msra.mxu0 %v378
  %759 = vmatprep.subr.mxu0 0.0
  %760 = vmatpush1.msra.mxu0 %v381
  %761 = vmatprep.subr.mxu0 0.0
  %762 = vmatpush1.msra.mxu0 %v384
  %763 = vmatprep.subr.mxu0 0.0
  %764 = vmatpush1.msra.mxu0 %v387
  %765 = vmatprep.subr.mxu0 0.0
  %766 = vmatpush1.msra.mxu0 %v390
  %767 = vmatprep.subr.mxu0 0.0
  %768 = vmatpush1.msra.mxu0 %v393
  %769 = vmatprep.subr.mxu0 0.0
  %770 = vmatpush1.msra.mxu0 0.0
  %771 = vmatprep.subr.mxu0 0.0
  %772 = vmatpush1.msra.mxu0 0.0
  %773 = vmatprep.subr.mxu0 0.0
  %774 = vmatpush1.msra.mxu0 0.0
  %775 = vmatprep.subr.mxu0 0.0
  %776 = vmatpush1.msra.mxu0 0.0
  %777 = vmatprep.subr.mxu0 0.0
  %778 = vmatpush1.msra.mxu0 0.0
  %779 = vmatprep.subr.mxu0 0.0
  %780 = vmatpush1.msra.mxu0 0.0
  %781 = vmatprep.subr.mxu0 0.0
  %782 = vmatpush1.msra.mxu0 0.0
  %783 = vmatprep.subr.mxu0 0.0
  %784 = vmatpush1.msra.mxu0 0.0
  %785 = vmatprep.subr.mxu0 0.0
  %786 = vmatpush1.msra.mxu0 0.0
  %787 = vmatprep.subr.mxu0 0.0
  %788 = vmatpush1.msra.mxu0 0.0
  %789 = vmatprep.subr.mxu0 0.0
  %790 = vmatpush1.msra.mxu0 0.0
  %791 = vmatprep.subr.mxu0 0.0
  %792 = vmatpush1.msra.mxu0 0.0
  %793 = vmatprep.subr.mxu0 0.0
  %794 = vmatpush1.msra.mxu0 0.0
  %795 = vmatprep.subr.mxu0 0.0
  %796 = vmatpush1.msra.mxu0 0.0
  %797 = vmatprep.subr.mxu0 0.0
  %798 = vmatpush1.msra.mxu0 0.0
  %799 = vmatprep.subr.mxu0 0.0
  %800 = vmatpush1.msra.mxu0 0.0
  %801 = vmatprep.mubr.f32.mxu0 0.0
  %802 = vmatmul.mubr.f32.gmra.mrb[0].mxu0 %v566
  %v803 = vpop.f32.mrb[0].mxu0
  %v804 = vadd.f32 0.0, %v803
  %v805 = vpop.f32.mrb[0].mxu0
  %806 = vdwg.mxu0
  %v807 = vadd.f32 %v663, %v733
  %v808 = vxor.u32 %v807, 2147483648
  %v809 = vmul.f32 %v808, 1.442695
  %v810 = vpow.pop %v809
  %v811 = vadd.f32 %v810, 1.0
  %v812 = vrcp.pop %v811
  %v813 = vmul.f32 1.0, %v812
  %v814 = vadd.f32 %v664, %v735
  %v815 = vxor.u32 %v814, 2147483648
  %v816 = vmul.f32 %v815, 1.442695
  %v817 = vpow.pop %v816
  %v818 = vadd.f32 %v817, 1.0
  %v819 = vrcp.pop %v818
  %v820 = vmul.f32 1.0, %v819
  %v821 = vadd.f32 %v804, %v399
  %v822 = vmul.f32 %v813, %v821
  %v823 = vadd.f32 %v665, %v822
  %v824 = vtanh.pop %v823
  %v825 = vsub.f32 %v566, %v824
  %v826 = vmul.f32 %v820, %v825
  %v827 = vadd.f32 %v824, %v826
  %s828 = scalar_lea.vmem [#allocation2], 48
  %v829 = vld [vmem:[%s828] sm:$0xff]
  %v830 = vld [vmem:[%s828 + $0x8] sm:$0xff]
  %v831 = vld [vmem:[%s828 + $0x10] sm:$0xff]
  %832 = vmatprep.subr.mxu0 %v347
  %833 = vmatpush1.msra.mxu0 %v346
  %834 = vmatprep.subr.mxu0 %v350
  %835 = vmatpush1.msra.mxu0 %v349
  %836 = vmatprep.subr.mxu0 %v353
  %837 = vmatpush1.msra.mxu0 %v352
  %838 = vmatprep.subr.mxu0 %v356
  %839 = vmatpush1.msra.mxu0 %v355
  %840 = vmatprep.subr.mxu0 %v359
  %841 = vmatpush1.msra.mxu0 %v358
  %842 = vmatprep.subr.mxu0 %v362
  %843 = vmatpush1.msra.mxu0 %v361
  %844 = vmatprep.subr.mxu0 %v365
  %845 = vmatpush1.msra.mxu0 %v364
  %846 = vmatprep.subr.mxu0 %v368
  %847 = vmatpush1.msra.mxu0 %v367
  %848 = vmatprep.subr.mxu0 %v371
  %849 = vmatpush1.msra.mxu0 %v370
  %850 = vmatprep.subr.mxu0 %v374
  %851 = vmatpush1.msra.mxu0 %v373
  %852 = vmatprep.subr.mxu0 %v377
  %853 = vmatpush1.msra.mxu0 %v376
  %854 = vmatprep.subr.mxu0 %v380
  %855 = vmatpush1.msra.mxu0 %v379
  %856 = vmatprep.subr.mxu0 %v383
  %857 = vmatpush1.msra.mxu0 %v382
  %858 = vmatprep.subr.mxu0 %v386
  %859 = vmatpush1.msra.mxu0 %v385
  %860 = vmatprep.subr.mxu0 %v389
  %861 = vmatpush1.msra.mxu0 %v388
  %862 = vmatprep.subr.mxu0 %v392
  %863 = vmatpush1.msra.mxu0 %v391
  %864 = vmatprep.subr.mxu0 0.0
  %865 = vmatpush1.msra.mxu0 0.0
  %866 = vmatprep.subr.mxu0 0.0
  %867 = vmatpush1.msra.mxu0 0.0
  %868 = vmatprep.subr.mxu0 0.0
  %869 = vmatpush1.msra.mxu0 0.0
  %870 = vmatprep.subr.mxu0 0.0
  %871 = vmatpush1.msra.mxu0 0.0
  %872 = vmatprep.subr.mxu0 0.0
  %873 = vmatpush1.msra.mxu0 0.0
  %874 = vmatprep.subr.mxu0 0.0
  %875 = vmatpush1.msra.mxu0 0.0
  %876 = vmatprep.subr.mxu0 0.0
  %877 = vmatpush1.msra.mxu0 0.0
  %878 = vmatprep.subr.mxu0 0.0
  %879 = vmatpush1.msra.mxu0 0.0
  %880 = vmatprep.subr.mxu0 0.0
  %881 = vmatpush1.msra.mxu0 0.0
  %882 = vmatprep.subr.mxu0 0.0
  %883 = vmatpush1.msra.mxu0 0.0
  %884 = vmatprep.subr.mxu0 0.0
  %885 = vmatpush1.msra.mxu0 0.0
  %886 = vmatprep.subr.mxu0 0.0
  %887 = vmatpush1.msra.mxu0 0.0
  %888 = vmatprep.subr.mxu0 0.0
  %889 = vmatpush1.msra.mxu0 0.0
  %890 = vmatprep.subr.mxu0 0.0
  %891 = vmatpush1.msra.mxu0 0.0
  %892 = vmatprep.subr.mxu0 0.0
  %893 = vmatpush1.msra.mxu0 0.0
  %894 = vmatprep.subr.mxu0 0.0
  %895 = vmatpush1.msra.mxu0 0.0
  %896 = vmatprep.mubr.f32.mxu0 0.0
  %897 = vmatmul.mubr.f32.gmra.mrb[0].mxu0 %v827
  %v898 = vpop.f32.mrb[0].mxu0
  %v899 = vadd.f32 0.0, %v898
  %v900 = vpop.f32.mrb[0].mxu0
  %v901 = vadd.f32 0.0, %v900
  %902 = vdwg.mxu0
  %903 = vmatprep.subr.mxu0 0.0
  %904 = vmatpush1.msra.mxu0 %v348
  %905 = vmatprep.subr.mxu0 0.0
  %906 = vmatpush1.msra.mxu0 %v351
  %907 = vmatprep.subr.mxu0 0.0
  %908 = vmatpush1.msra.mxu0 %v354
  %909 = vmatprep.subr.mxu0 0.0
  %910 = vmatpush1.msra.mxu0 %v357
  %911 = vmatprep.subr.mxu0 0.0
  %912 = vmatpush1.msra.mxu0 %v360
  %913 = vmatprep.subr.mxu0 0.0
  %914 = vmatpush1.msra.mxu0 %v363
  %915 = vmatprep.subr.mxu0 0.0
  %916 = vmatpush1.msra.mxu0 %v366
  %917 = vmatprep.subr.mxu0 0.0
  %918 = vmatpush1.msra.mxu0 %v369
  %919 = vmatprep.subr.mxu0 0.0
  %920 = vmatpush1.msra.mxu0 %v372
  %921 = vmatprep.subr.mxu0 0.0
  %922 = vmatpush1.msra.mxu0 %v375
  %923 = vmatprep.subr.mxu0 0.0
  %924 = vmatpush1.msra.mxu0 %v378
  %925 = vmatprep.subr.mxu0 0.0
  %926 = vmatpush1.msra.mxu0 %v381
  %927 = vmatprep.subr.mxu0 0.0
  %928 = vmatpush1.msra.mxu0 %v384
  %929 = vmatprep.subr.mxu0 0.0
  %930 = vmatpush1.msra.mxu0 %v387
  %931 = vmatprep.subr.mxu0 0.0
  %932 = vmatpush1.msra.mxu0 %v390
  %933 = vmatprep.subr.mxu0 0.0
  %934 = vmatpush1.msra.mxu0 %v393
  %935 = vmatprep.subr.mxu0 0.0
  %936 = vmatpush1.msra.mxu0 0.0
  %937 = vmatprep.subr.mxu0 0.0
  %938 = vmatpush1.msra.mxu0 0.0
  %939 = vmatprep.subr.mxu0 0.0
  %940 = vmatpush1.msra.mxu0 0.0
  %941 = vmatprep.subr.mxu0 0.0
  %942 = vmatpush1.msra.mxu0 0.0
  %943 = vmatprep.subr.mxu0 0.0
  %944 = vmatpush1.msra.mxu0 0.0
  %945 = vmatprep.subr.mxu0 0.0
  %946 = vmatpush1.msra.mxu0 0.0
  %947 = vmatprep.subr.mxu0 0.0
  %948 = vmatpush1.msra.mxu0 0.0
  %949 = vmatprep.subr.mxu0 0.0
  %950 = vmatpush1.msra.mxu0 0.0
  %951 = vmatprep.subr.mxu0 0.0
  %952 = vmatpush1.msra.mxu0 0.0
  %953 = vmatprep.subr.mxu0 0.0
  %954 = vmatpush1.msra.mxu0 0.0
  %955 = vmatprep.subr.mxu0 0.0
  %956 = vmatpush1.msra.mxu0 0.0
  %957 = vmatprep.subr.mxu0 0.0
  %958 = vmatpush1.msra.mxu0 0.0
  %959 = vmatprep.subr.mxu0 0.0
  %960 = vmatpush1.msra.mxu0 0.0
  %961 = vmatprep.subr.mxu0 0.0
  %962 = vmatpush1.msra.mxu0 0.0
  %963 = vmatprep.subr.mxu0 0.0
  %964 = vmatpush1.msra.mxu0 0.0
  %965 = vmatprep.subr.mxu0 0.0
  %966 = vmatpush1.msra.mxu0 0.0
  %967 = vmatprep.mubr.f32.mxu0 0.0
  %968 = vmatmul.mubr.f32.gmra.mrb[0].mxu0 %v827
  %v969 = vpop.f32.mrb[0].mxu0
  %v970 = vadd.f32 0.0, %v969
  %v971 = vpop.f32.mrb[0].mxu0
  %972 = vdwg.mxu0
  %v973 = vadd.f32 %v829, %v899
  %v974 = vxor.u32 %v973, 2147483648
  %v975 = vmul.f32 %v974, 1.442695
  %v976 = vpow.pop %v975
  %v977 = vadd.f32 %v976, 1.0
  %v978 = vrcp.pop %v977
  %v979 = vmul.f32 1.0, %v978
  %v980 = vadd.f32 %v830, %v901
  %v981 = vxor.u32 %v980, 2147483648
  %v982 = vmul.f32 %v981, 1.442695
  %v983 = vpow.pop %v982
  %v984 = vadd.f32 %v983, 1.0
  %v985 = vrcp.pop %v984
  %v986 = vmul.f32 1.0, %v985
  %v987 = vadd.f32 %v970, %v399
  %v988 = vmul.f32 %v979, %v987
  %v989 = vadd.f32 %v831, %v988
  %v990 = vtanh.pop %v989
  %v991 = vsub.f32 %v827, %v990
  %v992 = vmul.f32 %v986, %v991
  %v993 = vadd.f32 %v990, %v992
  %s994 = scalar_lea.vmem [#allocation2], 72
  %v995 = vld [vmem:[%s994] sm:$0xff]
  %v996 = vld [vmem:[%s994 + $0x8] sm:$0xff]
  %v997 = vld [vmem:[%s994 + $0x10] sm:$0xff]
  %998 = vmatprep.subr.mxu0 %v347
  %999 = vmatpush1.msra.mxu0 %v346
  %1000 = vmatprep.subr.mxu0 %v350
  %1001 = vmatpush1.msra.mxu0 %v349
  %1002 = vmatprep.subr.mxu0 %v353
  %1003 = vmatpush1.msra.mxu0 %v352
  %1004 = vmatprep.subr.mxu0 %v356
  %1005 = vmatpush1.msra.mxu0 %v355
  %1006 = vmatprep.subr.mxu0 %v359
  %1007 = vmatpush1.msra.mxu0 %v358
  %1008 = vmatprep.subr.mxu0 %v362
  %1009 = vmatpush1.msra.mxu0 %v361
  %1010 = vmatprep.subr.mxu0 %v365
  %1011 = vmatpush1.msra.mxu0 %v364
  %1012 = vmatprep.subr.mxu0 %v368
  %1013 = vmatpush1.msra.mxu0 %v367
  %1014 = vmatprep.subr.mxu0 %v371
  %1015 = vmatpush1.msra.mxu0 %v370
  %1016 = vmatprep.subr.mxu0 %v374
  %1017 = vmatpush1.msra.mxu0 %v373
  %1018 = vmatprep.subr.mxu0 %v377
  %1019 = vmatpush1.msra.mxu0 %v376
  %1020 = vmatprep.subr.mxu0 %v380
  %1021 = vmatpush1.msra.mxu0 %v379
  %1022 = vmatprep.subr.mxu0 %v383
  %1023 = vmatpush1.msra.mxu0 %v382
  %1024 = vmatprep.subr.mxu0 %v386
  %1025 = vmatpush1.msra.mxu0 %v385
  %1026 = vmatprep.subr.mxu0 %v389
  %1027 = vmatpush1.msra.mxu0 %v388
  %1028 = vmatprep.subr.mxu0 %v392
  %1029 = vmatpush1.msra.mxu0 %v391
  %1030 = vmatprep.subr.mxu0 0.0
  %1031 = vmatpush1.msra.mxu0 0.0
  %1032 = vmatprep.subr.mxu0 0.0
  %1033 = vmatpush1.msra.mxu0 0.0
  %1034 = vmatprep.subr.mxu0 0.0
  %1035 = vmatpush1.msra.mxu0 0.0
  %1036 = vmatprep.subr.mxu0 0.0
  %1037 = vmatpush1.msra.mxu0 0.0
  %1038 = vmatprep.subr.mxu0 0.0
  %1039 = vmatpush1.msra.mxu0 0.0
  %1040 = vmatprep.subr.mxu0 0.0
  %1041 = vmatpush1.msra.mxu0 0.0
  %1042 = vmatprep.subr.mxu0 0.0
  %1043 = vmatpush1.msra.mxu0 0.0
  %1044 = vmatprep.subr.mxu0 0.0
  %1045 = vmatpush1.msra.mxu0 0.0
  %1046 = vmatprep.subr.mxu0 0.0
  %1047 = vmatpush1.msra.mxu0 0.0
  %1048 = vmatprep.subr.mxu0 0.0
  %1049 = vmatpush1.msra.mxu0 0.0
  %1050 = vmatprep.subr.mxu0 0.0
  %1051 = vmatpush1.msra.mxu0 0.0
  %1052 = vmatprep.subr.mxu0 0.0
  %1053 = vmatpush1.msra.mxu0 0.0
  %1054 = vmatprep.subr.mxu0 0.0
  %1055 = vmatpush1.msra.mxu0 0.0
  %1056 = vmatprep.subr.mxu0 0.0
  %1057 = vmatpush1.msra.mxu0 0.0
  %1058 = vmatprep.subr.mxu0 0.0
  %1059 = vmatpush1.msra.mxu0 0.0
  %1060 = vmatprep.subr.mxu0 0.0
  %1061 = vmatpush1.msra.mxu0 0.0
  %1062 = vmatprep.mubr.f32.mxu0 0.0
  %1063 = vmatmul.mubr.f32.gmra.mrb[0].mxu0 %v993
  %v1064 = vpop.f32.mrb[0].mxu0
  %v1065 = vadd.f32 0.0, %v1064
  %v1066 = vpop.f32.mrb[0].mxu0
  %v1067 = vadd.f32 0.0, %v1066
  %1068 = vdwg.mxu0
  %1069 = vmatprep.subr.mxu0 0.0
  %1070 = vmatpush1.msra.mxu0 %v348
  %1071 = vmatprep.subr.mxu0 0.0
  %1072 = vmatpush1.msra.mxu0 %v351
  %1073 = vmatprep.subr.mxu0 0.0
  %1074 = vmatpush1.msra.mxu0 %v354
  %1075 = vmatprep.subr.mxu0 0.0
  %1076 = vmatpush1.msra.mxu0 %v357
  %1077 = vmatprep.subr.mxu0 0.0
  %1078 = vmatpush1.msra.mxu0 %v360
  %1079 = vmatprep.subr.mxu0 0.0
  %1080 = vmatpush1.msra.mxu0 %v363
  %1081 = vmatprep.subr.mxu0 0.0
  %1082 = vmatpush1.msra.mxu0 %v366
  %1083 = vmatprep.subr.mxu0 0.0
  %1084 = vmatpush1.msra.mxu0 %v369
  %1085 = vmatprep.subr.mxu0 0.0
  %1086 = vmatpush1.msra.mxu0 %v372
  %1087 = vmatprep.subr.mxu0 0.0
  %1088 = vmatpush1.msra.mxu0 %v375
  %1089 = vmatprep.subr.mxu0 0.0
  %1090 = vmatpush1.msra.mxu0 %v378
  %1091 = vmatprep.subr.mxu0 0.0
  %1092 = vmatpush1.msra.mxu0 %v381
  %1093 = vmatprep.subr.mxu0 0.0
  %1094 = vmatpush1.msra.mxu0 %v384
  %1095 = vmatprep.subr.mxu0 0.0
  %1096 = vmatpush1.msra.mxu0 %v387
  %1097 = vmatprep.subr.mxu0 0.0
  %1098 = vmatpush1.msra.mxu0 %v390
  %1099 = vmatprep.subr.mxu0 0.0
  %1100 = vmatpush1.msra.mxu0 %v393
  %1101 = vmatprep.subr.mxu0 0.0
  %1102 = vmatpush1.msra.mxu0 0.0
  %1103 = vmatprep.subr.mxu0 0.0
  %1104 = vmatpush1.msra.mxu0 0.0
  %1105 = vmatprep.subr.mxu0 0.0
  %1106 = vmatpush1.msra.mxu0 0.0
  %1107 = vmatprep.subr.mxu0 0.0
  %1108 = vmatpush1.msra.mxu0 0.0
  %1109 = vmatprep.subr.mxu0 0.0
  %1110 = vmatpush1.msra.mxu0 0.0
  %1111 = vmatprep.subr.mxu0 0.0
  %1112 = vmatpush1.msra.mxu0 0.0
  %1113 = vmatprep.subr.mxu0 0.0
  %1114 = vmatpush1.msra.mxu0 0.0
  %1115 = vmatprep.subr.mxu0 0.0
  %1116 = vmatpush1.msra.mxu0 0.0
  %1117 = vmatprep.subr.mxu0 0.0
  %1118 = vmatpush1.msra.mxu0 0.0
  %1119 = vmatprep.subr.mxu0 0.0
  %1120 = vmatpush1.msra.mxu0 0.0
  %1121 = vmatprep.subr.mxu0 0.0
  %1122 = vmatpush1.msra.mxu0 0.0
  %1123 = vmatprep.subr.mxu0 0.0
  %1124 = vmatpush1.msra.mxu0 0.0
  %1125 = vmatprep.subr.mxu0 0.0
  %1126 = vmatpush1.msra.mxu0 0.0
  %1127 = vmatprep.subr.mxu0 0.0
  %1128 = vmatpush1.msra.mxu0 0.0
  %1129 = vmatprep.subr.mxu0 0.0
  %1130 = vmatpush1.msra.mxu0 0.0
  %1131 = vmatprep.subr.mxu0 0.0
  %1132 = vmatpush1.msra.mxu0 0.0
  %1133 = vmatprep.mubr.f32.mxu0 0.0
  %1134 = vmatmul.mubr.f32.gmra.mrb[0].mxu0 %v993
  %v1135 = vpop.f32.mrb[0].mxu0
  %v1136 = vadd.f32 0.0, %v1135
  %v1137 = vpop.f32.mrb[0].mxu0
  %1138 = vdwg.mxu0
  %v1139 = vadd.f32 %v995, %v1065
  %v1140 = vxor.u32 %v1139, 2147483648
  %v1141 = vmul.f32 %v1140, 1.442695
  %v1142 = vpow.pop %v1141
  %v1143 = vadd.f32 %v1142, 1.0
  %v1144 = vrcp.pop %v1143
  %v1145 = vmul.f32 1.0, %v1144
  %v1146 = vadd.f32 %v996, %v1067
  %v1147 = vxor.u32 %v1146, 2147483648
  %v1148 = vmul.f32 %v1147, 1.442695
  %v1149 = vpow.pop %v1148
  %v1150 = vadd.f32 %v1149, 1.0
  %v1151 = vrcp.pop %v1150
  %v1152 = vmul.f32 1.0, %v1151
  %v1153 = vadd.f32 %v1136, %v399
  %v1154 = vmul.f32 %v1145, %v1153
  %v1155 = vadd.f32 %v997, %v1154
  %v1156 = vtanh.pop %v1155
  %v1157 = vsub.f32 %v993, %v1156
  %v1158 = vmul.f32 %v1152, %v1157
  %v1159 = vadd.f32 %v1156, %v1158
  %s1160 = scalar_lea.vmem [#allocation2], 96
  %v1161 = vld [vmem:[%s1160] sm:$0xff]
  %v1162 = vld [vmem:[%s1160 + $0x8] sm:$0xff]
  %v1163 = vld [vmem:[%s1160 + $0x10] sm:$0xff]
  %1164 = vmatprep.subr.mxu0 %v347
  %1165 = vmatpush1.msra.mxu0 %v346
  %1166 = vmatprep.subr.mxu0 %v350
  %1167 = vmatpush1.msra.mxu0 %v349
  %1168 = vmatprep.subr.mxu0 %v353
  %1169 = vmatpush1.msra.mxu0 %v352
  %1170 = vmatprep.subr.mxu0 %v356
  %1171 = vmatpush1.msra.mxu0 %v355
  %1172 = vmatprep.subr.mxu0 %v359
  %1173 = vmatpush1.msra.mxu0 %v358
  %1174 = vmatprep.subr.mxu0 %v362
  %1175 = vmatpush1.msra.mxu0 %v361
  %1176 = vmatprep.subr.mxu0 %v365
  %1177 = vmatpush1.msra.mxu0 %v364
  %1178 = vmatprep.subr.mxu0 %v368
  %1179 = vmatpush1.msra.mxu0 %v367
  %1180 = vmatprep.subr.mxu0 %v371
  %1181 = vmatpush1.msra.mxu0 %v370
  %1182 = vmatprep.subr.mxu0 %v374
  %1183 = vmatpush1.msra.mxu0 %v373
  %1184 = vmatprep.subr.mxu0 %v377
  %1185 = vmatpush1.msra.mxu0 %v376
  %1186 = vmatprep.subr.mxu0 %v380
  %1187 = vmatpush1.msra.mxu0 %v379
  %1188 = vmatprep.subr.mxu0 %v383
  %1189 = vmatpush1.msra.mxu0 %v382
  %1190 = vmatprep.subr.mxu0 %v386
  %1191 = vmatpush1.msra.mxu0 %v385
  %1192 = vmatprep.subr.mxu0 %v389
  %1193 = vmatpush1.msra.mxu0 %v388
  %1194 = vmatprep.subr.mxu0 %v392
  %1195 = vmatpush1.msra.mxu0 %v391
  %1196 = vmatprep.subr.mxu0 0.0
  %1197 = vmatpush1.msra.mxu0 0.0
  %1198 = vmatprep.subr.mxu0 0.0
  %1199 = vmatpush1.msra.mxu0 0.0
  %1200 = vmatprep.subr.mxu0 0.0
  %1201 = vmatpush1.msra.mxu0 0.0
  %1202 = vmatprep.subr.mxu0 0.0
  %1203 = vmatpush1.msra.mxu0 0.0
  %1204 = vmatprep.subr.mxu0 0.0
  %1205 = vmatpush1.msra.mxu0 0.0
  %1206 = vmatprep.subr.mxu0 0.0
  %1207 = vmatpush1.msra.mxu0 0.0
  %1208 = vmatprep.subr.mxu0 0.0
  %1209 = vmatpush1.msra.mxu0 0.0
  %1210 = vmatprep.subr.mxu0 0.0
  %1211 = vmatpush1.msra.mxu0 0.0
  %1212 = vmatprep.subr.mxu0 0.0
  %1213 = vmatpush1.msra.mxu0 0.0
  %1214 = vmatprep.subr.mxu0 0.0
  %1215 = vmatpush1.msra.mxu0 0.0
  %1216 = vmatprep.subr.mxu0 0.0
  %1217 = vmatpush1.msra.mxu0 0.0
  %1218 = vmatprep.subr.mxu0 0.0
  %1219 = vmatpush1.msra.mxu0 0.0
  %1220 = vmatprep.subr.mxu0 0.0
  %1221 = vmatpush1.msra.mxu0 0.0
  %1222 = vmatprep.subr.mxu0 0.0
  %1223 = vmatpush1.msra.mxu0 0.0
  %1224 = vmatprep.subr.mxu0 0.0
  %1225 = vmatpush1.msra.mxu0 0.0
  %1226 = vmatprep.subr.mxu0 0.0
  %1227 = vmatpush1.msra.mxu0 0.0
  %1228 = vmatprep.mubr.f32.mxu0 0.0
  %1229 = vmatmul.mubr.f32.gmra.mrb[0].mxu0 %v1159
  %v1230 = vpop.f32.mrb[0].mxu0
  %v1231 = vadd.f32 0.0, %v1230
  %v1232 = vpop.f32.mrb[0].mxu0
  %v1233 = vadd.f32 0.0, %v1232
  %1234 = vdwg.mxu0
  %1235 = vmatprep.subr.mxu0 0.0
  %1236 = vmatpush1.msra.mxu0 %v348
  %1237 = vmatprep.subr.mxu0 0.0
  %1238 = vmatpush1.msra.mxu0 %v351
  %1239 = vmatprep.subr.mxu0 0.0
  %1240 = vmatpush1.msra.mxu0 %v354
  %1241 = vmatprep.subr.mxu0 0.0
  %1242 = vmatpush1.msra.mxu0 %v357
  %1243 = vmatprep.subr.mxu0 0.0
  %1244 = vmatpush1.msra.mxu0 %v360
  %1245 = vmatprep.subr.mxu0 0.0
  %1246 = vmatpush1.msra.mxu0 %v363
  %1247 = vmatprep.subr.mxu0 0.0
  %1248 = vmatpush1.msra.mxu0 %v366
  %1249 = vmatprep.subr.mxu0 0.0
  %1250 = vmatpush1.msra.mxu0 %v369
  %1251 = vmatprep.subr.mxu0 0.0
  %1252 = vmatpush1.msra.mxu0 %v372
  %1253 = vmatprep.subr.mxu0 0.0
  %1254 = vmatpush1.msra.mxu0 %v375
  %1255 = vmatprep.subr.mxu0 0.0
  %1256 = vmatpush1.msra.mxu0 %v378
  %1257 = vmatprep.subr.mxu0 0.0
  %1258 = vmatpush1.msra.mxu0 %v381
  %1259 = vmatprep.subr.mxu0 0.0
  %1260 = vmatpush1.msra.mxu0 %v384
  %1261 = vmatprep.subr.mxu0 0.0
  %1262 = vmatpush1.msra.mxu0 %v387
  %1263 = vmatprep.subr.mxu0 0.0
  %1264 = vmatpush1.msra.mxu0 %v390
  %1265 = vmatprep.subr.mxu0 0.0
  %1266 = vmatpush1.msra.mxu0 %v393
  %1267 = vmatprep.subr.mxu0 0.0
  %1268 = vmatpush1.msra.mxu0 0.0
  %1269 = vmatprep.subr.mxu0 0.0
  %1270 = vmatpush1.msra.mxu0 0.0
  %1271 = vmatprep.subr.mxu0 0.0
  %1272 = vmatpush1.msra.mxu0 0.0
  %1273 = vmatprep.subr.mxu0 0.0
  %1274 = vmatpush1.msra.mxu0 0.0
  %1275 = vmatprep.subr.mxu0 0.0
  %1276 = vmatpush1.msra.mxu0 0.0
  %1277 = vmatprep.subr.mxu0 0.0
  %1278 = vmatpush1.msra.mxu0 0.0
  %1279 = vmatprep.subr.mxu0 0.0
  %1280 = vmatpush1.msra.mxu0 0.0
  %1281 = vmatprep.subr.mxu0 0.0
  %1282 = vmatpush1.msra.mxu0 0.0
  %1283 = vmatprep.subr.mxu0 0.0
  %1284 = vmatpush1.msra.mxu0 0.0
  %1285 = vmatprep.subr.mxu0 0.0
  %1286 = vmatpush1.msra.mxu0 0.0
  %1287 = vmatprep.subr.mxu0 0.0
  %1288 = vmatpush1.msra.mxu0 0.0
  %1289 = vmatprep.subr.mxu0 0.0
  %1290 = vmatpush1.msra.mxu0 0.0
  %1291 = vmatprep.subr.mxu0 0.0
  %1292 = vmatpush1.msra.mxu0 0.0
  %1293 = vmatprep.subr.mxu0 0.0
  %1294 = vmatpush1.msra.mxu0 0.0
  %1295 = vmatprep.subr.mxu0 0.0
  %1296 = vmatpush1.msra.mxu0 0.0
  %1297 = vmatprep.subr.mxu0 0.0
  %1298 = vmatpush1.msra.mxu0 0.0
  %1299 = vmatprep.mubr.f32.mxu0 0.0
  %1300 = vmatmul.mubr.f32.gmra.mrb[0].mxu0 %v1159
  %v1301 = vpop.f32.mrb[0].mxu0
  %v1302 = vadd.f32 0.0, %v1301
  %v1303 = vpop.f32.mrb[0].mxu0
  %1304 = vdwg.mxu0
  %v1305 = vadd.f32 %v1161, %v1231
  %v1306 = vxor.u32 %v1305, 2147483648
  %v1307 = vmul.f32 %v1306, 1.442695
  %v1308 = vpow.pop %v1307
  %v1309 = vadd.f32 %v1308, 1.0
  %v1310 = vrcp.pop %v1309
  %v1311 = vmul.f32 1.0, %v1310
  %v1312 = vadd.f32 %v1162, %v1233
  %v1313 = vxor.u32 %v1312, 2147483648
  %v1314 = vmul.f32 %v1313, 1.442695
  %v1315 = vpow.pop %v1314
  %v1316 = vadd.f32 %v1315, 1.0
  %v1317 = vrcp.pop %v1316
  %v1318 = vmul.f32 1.0, %v1317
  %v1319 = vadd.f32 %v1302, %v399
  %v1320 = vmul.f32 %v1311, %v1319
  %v1321 = vadd.f32 %v1163, %v1320
  %v1322 = vtanh.pop %v1321
  %v1323 = vsub.f32 %v1159, %v1322
  %v1324 = vmul.f32 %v1318, %v1323
  %v1325 = vadd.f32 %v1322, %v1324
  %s1326 = scalar_lea.vmem [#allocation2], 120
  %v1327 = vld [vmem:[%s1326] sm:$0xff]
  %v1328 = vld [vmem:[%s1326 + $0x8] sm:$0xff]
  %v1329 = vld [vmem:[%s1326 + $0x10] sm:$0xff]
  %1330 = vmatprep.subr.mxu0 %v347
  %1331 = vmatpush1.msra.mxu0 %v346
  %1332 = vmatprep.subr.mxu0 %v350
  %1333 = vmatpush1.msra.mxu0 %v349
  %1334 = vmatprep.subr.mxu0 %v353
  %1335 = vmatpush1.msra.mxu0 %v352
  %1336 = vmatprep.subr.mxu0 %v356
  %1337 = vmatpush1.msra.mxu0 %v355
  %1338 = vmatprep.subr.mxu0 %v359
  %1339 = vmatpush1.msra.mxu0 %v358
  %1340 = vmatprep.subr.mxu0 %v362
  %1341 = vmatpush1.msra.mxu0 %v361
  %1342 = vmatprep.subr.mxu0 %v365
  %1343 = vmatpush1.msra.mxu0 %v364
  %1344 = vmatprep.subr.mxu0 %v368
  %1345 = vmatpush1.msra.mxu0 %v367
  %1346 = vmatprep.subr.mxu0 %v371
  %1347 = vmatpush1.msra.mxu0 %v370
  %1348 = vmatprep.subr.mxu0 %v374
  %1349 = vmatpush1.msra.mxu0 %v373
  %1350 = vmatprep.subr.mxu0 %v377
  %1351 = vmatpush1.msra.mxu0 %v376
  %1352 = vmatprep.subr.mxu0 %v380
  %1353 = vmatpush1.msra.mxu0 %v379
  %1354 = vmatprep.subr.mxu0 %v383
  %1355 = vmatpush1.msra.mxu0 %v382
  %1356 = vmatprep.subr.mxu0 %v386
  %1357 = vmatpush1.msra.mxu0 %v385
  %1358 = vmatprep.subr.mxu0 %v389
  %1359 = vmatpush1.msra.mxu0 %v388
  %1360 = vmatprep.subr.mxu0 %v392
  %1361 = vmatpush1.msra.mxu0 %v391
  %1362 = vmatprep.subr.mxu0 0.0
  %1363 = vmatpush1.msra.mxu0 0.0
  %1364 = vmatprep.subr.mxu0 0.0
  %1365 = vmatpush1.msra.mxu0 0.0
  %1366 = vmatprep.subr.mxu0 0.0
  %1367 = vmatpush1.msra.mxu0 0.0
  %1368 = vmatprep.subr.mxu0 0.0
  %1369 = vmatpush1.msra.mxu0 0.0
  %1370 = vmatprep.subr.mxu0 0.0
  %1371 = vmatpush1.msra.mxu0 0.0
  %1372 = vmatprep.subr.mxu0 0.0
  %1373 = vmatpush1.msra.mxu0 0.0
  %1374 = vmatprep.subr.mxu0 0.0
  %1375 = vmatpush1.msra.mxu0 0.0
  %1376 = vmatprep.subr.mxu0 0.0
  %1377 = vmatpush1.msra.mxu0 0.0
  %1378 = vmatprep.subr.mxu0 0.0
  %1379 = vmatpush1.msra.mxu0 0.0
  %1380 = vmatprep.subr.mxu0 0.0
  %1381 = vmatpush1.msra.mxu0 0.0
  %1382 = vmatprep.subr.mxu0 0.0
  %1383 = vmatpush1.msra.mxu0 0.0
  %1384 = vmatprep.subr.mxu0 0.0
  %1385 = vmatpush1.msra.mxu0 0.0
  %1386 = vmatprep.subr.mxu0 0.0
  %1387 = vmatpush1.msra.mxu0 0.0
  %1388 = vmatprep.subr.mxu0 0.0
  %1389 = vmatpush1.msra.mxu0 0.0
  %1390 = vmatprep.subr.mxu0 0.0
  %1391 = vmatpush1.msra.mxu0 0.0
  %1392 = vmatprep.subr.mxu0 0.0
  %1393 = vmatpush1.msra.mxu0 0.0
  %1394 = vmatprep.mubr.f32.mxu0 0.0
  %1395 = vmatmul.mubr.f32.gmra.mrb[0].mxu0 %v1325
  %v1396 = vpop.f32.mrb[0].mxu0
  %v1397 = vadd.f32 0.0, %v1396
  %v1398 = vpop.f32.mrb[0].mxu0
  %v1399 = vadd.f32 0.0, %v1398
  %1400 = vdwg.mxu0
  %1401 = vmatprep.subr.mxu0 0.0
  %1402 = vmatpush1.msra.mxu0 %v348
  %1403 = vmatprep.subr.mxu0 0.0
  %1404 = vmatpush1.msra.mxu0 %v351
  %1405 = vmatprep.subr.mxu0 0.0
  %1406 = vmatpush1.msra.mxu0 %v354
  %1407 = vmatprep.subr.mxu0 0.0
  %1408 = vmatpush1.msra.mxu0 %v357
  %1409 = vmatprep.subr.mxu0 0.0
  %1410 = vmatpush1.msra.mxu0 %v360
  %1411 = vmatprep.subr.mxu0 0.0
  %1412 = vmatpush1.msra.mxu0 %v363
  %1413 = vmatprep.subr.mxu0 0.0
  %1414 = vmatpush1.msra.mxu0 %v366
  %1415 = vmatprep.subr.mxu0 0.0
  %1416 = vmatpush1.msra.mxu0 %v369
  %1417 = vmatprep.subr.mxu0 0.0
  %1418 = vmatpush1.msra.mxu0 %v372
  %1419 = vmatprep.subr.mxu0 0.0
  %1420 = vmatpush1.msra.mxu0 %v375
  %1421 = vmatprep.subr.mxu0 0.0
  %1422 = vmatpush1.msra.mxu0 %v378
  %1423 = vmatprep.subr.mxu0 0.0
  %1424 = vmatpush1.msra.mxu0 %v381
  %1425 = vmatprep.subr.mxu0 0.0
  %1426 = vmatpush1.msra.mxu0 %v384
  %1427 = vmatprep.subr.mxu0 0.0
  %1428 = vmatpush1.msra.mxu0 %v387
  %1429 = vmatprep.subr.mxu0 0.0
  %1430 = vmatpush1.msra.mxu0 %v390
  %1431 = vmatprep.subr.mxu0 0.0
  %1432 = vmatpush1.msra.mxu0 %v393
  %1433 = vmatprep.subr.mxu0 0.0
  %1434 = vmatpush1.msra.mxu0 0.0
  %1435 = vmatprep.subr.mxu0 0.0
  %1436 = vmatpush1.msra.mxu0 0.0
  %1437 = vmatprep.subr.mxu0 0.0
  %1438 = vmatpush1.msra.mxu0 0.0
  %1439 = vmatprep.subr.mxu0 0.0
  %1440 = vmatpush1.msra.mxu0 0.0
  %1441 = vmatprep.subr.mxu0 0.0
  %1442 = vmatpush1.msra.mxu0 0.0
  %1443 = vmatprep.subr.mxu0 0.0
  %1444 = vmatpush1.msra.mxu0 0.0
  %1445 = vmatprep.subr.mxu0 0.0
  %1446 = vmatpush1.msra.mxu0 0.0
  %1447 = vmatprep.subr.mxu0 0.0
  %1448 = vmatpush1.msra.mxu0 0.0
  %1449 = vmatprep.subr.mxu0 0.0
  %1450 = vmatpush1.msra.mxu0 0.0
  %1451 = vmatprep.subr.mxu0 0.0
  %1452 = vmatpush1.msra.mxu0 0.0
  %1453 = vmatprep.subr.mxu0 0.0
  %1454 = vmatpush1.msra.mxu0 0.0
  %1455 = vmatprep.subr.mxu0 0.0
  %1456 = vmatpush1.msra.mxu0 0.0
  %1457 = vmatprep.subr.mxu0 0.0
  %1458 = vmatpush1.msra.mxu0 0.0
  %1459 = vmatprep.subr.mxu0 0.0
  %1460 = vmatpush1.msra.mxu0 0.0
  %1461 = vmatprep.subr.mxu0 0.0
  %1462 = vmatpush1.msra.mxu0 0.0
  %1463 = vmatprep.subr.mxu0 0.0
  %1464 = vmatpush1.msra.mxu0 0.0
  %1465 = vmatprep.mubr.f32.mxu0 0.0
  %1466 = vmatmul.mubr.f32.gmra.mrb[0].mxu0 %v1325
  %v1467 = vpop.f32.mrb[0].mxu0
  %v1468 = vadd.f32 0.0, %v1467
  %v1469 = vpop.f32.mrb[0].mxu0
  %1470 = vdwg.mxu0
  %v1471 = vadd.f32 %v1327, %v1397
  %v1472 = vxor.u32 %v1471, 2147483648
  %v1473 = vmul.f32 %v1472, 1.442695
  %v1474 = vpow.pop %v1473
  %v1475 = vadd.f32 %v1474, 1.0
  %v1476 = vrcp.pop %v1475
  %v1477 = vmul.f32 1.0, %v1476
  %v1478 = vadd.f32 %v1328, %v1399
  %v1479 = vxor.u32 %v1478, 2147483648
  %v1480 = vmul.f32 %v1479, 1.442695
  %v1481 = vpow.pop %v1480
  %v1482 = vadd.f32 %v1481, 1.0
  %v1483 = vrcp.pop %v1482
  %v1484 = vmul.f32 1.0, %v1483
  %v1485 = vadd.f32 %v1468, %v399
  %v1486 = vmul.f32 %v1477, %v1485
  %v1487 = vadd.f32 %v1329, %v1486
  %v1488 = vtanh.pop %v1487
  %v1489 = vsub.f32 %v1325, %v1488
  %v1490 = vmul.f32 %v1484, %v1489
  %v1491 = vadd.f32 %v1488, %v1490
  %s1492 = scalar_lea.vmem [#allocation2], 144
  %v1493 = vld [vmem:[%s1492] sm:$0xff]
  %v1494 = vld [vmem:[%s1492 + $0x8] sm:$0xff]
  %v1495 = vld [vmem:[%s1492 + $0x10] sm:$0xff]
  %1496 = vmatprep.subr.mxu0 %v347
  %1497 = vmatpush1.msra.mxu0 %v346
  %1498 = vmatprep.subr.mxu0 %v350
  %1499 = vmatpush1.msra.mxu0 %v349
  %1500 = vmatprep.subr.mxu0 %v353
  %1501 = vmatpush1.msra.mxu0 %v352
  %1502 = vmatprep.subr.mxu0 %v356
  %1503 = vmatpush1.msra.mxu0 %v355
  %1504 = vmatprep.subr.mxu0 %v359
  %1505 = vmatpush1.msra.mxu0 %v358
  %1506 = vmatprep.subr.mxu0 %v362
  %1507 = vmatpush1.msra.mxu0 %v361
  %1508 = vmatprep.subr.mxu0 %v365
  %1509 = vmatpush1.msra.mxu0 %v364
  %1510 = vmatprep.subr.mxu0 %v368
  %1511 = vmatpush1.msra.mxu0 %v367
  %1512 = vmatprep.subr.mxu0 %v371
  %1513 = vmatpush1.msra.mxu0 %v370
  %1514 = vmatprep.subr.mxu0 %v374
  %1515 = vmatpush1.msra.mxu0 %v373
  %1516 = vmatprep.subr.mxu0 %v377
  %1517 = vmatpush1.msra.mxu0 %v376
  %1518 = vmatprep.subr.mxu0 %v380
  %1519 = vmatpush1.msra.mxu0 %v379
  %1520 = vmatprep.subr.mxu0 %v383
  %1521 = vmatpush1.msra.mxu0 %v382
  %1522 = vmatprep.subr.mxu0 %v386
  %1523 = vmatpush1.msra.mxu0 %v385
  %1524 = vmatprep.subr.mxu0 %v389
  %1525 = vmatpush1.msra.mxu0 %v388
  %1526 = vmatprep.subr.mxu0 %v392
  %1527 = vmatpush1.msra.mxu0 %v391
  %1528 = vmatprep.subr.mxu0 0.0
  %1529 = vmatpush1.msra.mxu0 0.0
  %1530 = vmatprep.subr.mxu0 0.0
  %1531 = vmatpush1.msra.mxu0 0.0
  %1532 = vmatprep.subr.mxu0 0.0
  %1533 = vmatpush1.msra.mxu0 0.0
  %1534 = vmatprep.subr.mxu0 0.0
  %1535 = vmatpush1.msra.mxu0 0.0
  %1536 = vmatprep.subr.mxu0 0.0
  %1537 = vmatpush1.msra.mxu0 0.0
  %1538 = vmatprep.subr.mxu0 0.0
  %1539 = vmatpush1.msra.mxu0 0.0
  %1540 = vmatprep.subr.mxu0 0.0
  %1541 = vmatpush1.msra.mxu0 0.0
  %1542 = vmatprep.subr.mxu0 0.0
  %1543 = vmatpush1.msra.mxu0 0.0
  %1544 = vmatprep.subr.mxu0 0.0
  %1545 = vmatpush1.msra.mxu0 0.0
  %1546 = vmatprep.subr.mxu0 0.0
  %1547 = vmatpush1.msra.mxu0 0.0
  %1548 = vmatprep.subr.mxu0 0.0
  %1549 = vmatpush1.msra.mxu0 0.0
  %1550 = vmatprep.subr.mxu0 0.0
  %1551 = vmatpush1.msra.mxu0 0.0
  %1552 = vmatprep.subr.mxu0 0.0
  %1553 = vmatpush1.msra.mxu0 0.0
  %1554 = vmatprep.subr.mxu0 0.0
  %1555 = vmatpush1.msra.mxu0 0.0
  %1556 = vmatprep.subr.mxu0 0.0
  %1557 = vmatpush1.msra.mxu0 0.0
  %1558 = vmatprep.subr.mxu0 0.0
  %1559 = vmatpush1.msra.mxu0 0.0
  %1560 = vmatprep.mubr.f32.mxu0 0.0
  %1561 = vmatmul.mubr.f32.gmra.mrb[0].mxu0 %v1491
  %v1562 = vpop.f32.mrb[0].mxu0
  %v1563 = vadd.f32 0.0, %v1562
  %v1564 = vpop.f32.mrb[0].mxu0
  %v1565 = vadd.f32 0.0, %v1564
  %1566 = vdwg.mxu0
  %1567 = vmatprep.subr.mxu0 0.0
  %1568 = vmatpush1.msra.mxu0 %v348
  %1569 = vmatprep.subr.mxu0 0.0
  %1570 = vmatpush1.msra.mxu0 %v351
  %1571 = vmatprep.subr.mxu0 0.0
  %1572 = vmatpush1.msra.mxu0 %v354
  %1573 = vmatprep.subr.mxu0 0.0
  %1574 = vmatpush1.msra.mxu0 %v357
  %1575 = vmatprep.subr.mxu0 0.0
  %1576 = vmatpush1.msra.mxu0 %v360
  %1577 = vmatprep.subr.mxu0 0.0
  %1578 = vmatpush1.msra.mxu0 %v363
  %1579 = vmatprep.subr.mxu0 0.0
  %1580 = vmatpush1.msra.mxu0 %v366
  %1581 = vmatprep.subr.mxu0 0.0
  %1582 = vmatpush1.msra.mxu0 %v369
  %1583 = vmatprep.subr.mxu0 0.0
  %1584 = vmatpush1.msra.mxu0 %v372
  %1585 = vmatprep.subr.mxu0 0.0
  %1586 = vmatpush1.msra.mxu0 %v375
  %1587 = vmatprep.subr.mxu0 0.0
  %1588 = vmatpush1.msra.mxu0 %v378
  %1589 = vmatprep.subr.mxu0 0.0
  %1590 = vmatpush1.msra.mxu0 %v381
  %1591 = vmatprep.subr.mxu0 0.0
  %1592 = vmatpush1.msra.mxu0 %v384
  %1593 = vmatprep.subr.mxu0 0.0
  %1594 = vmatpush1.msra.mxu0 %v387
  %1595 = vmatprep.subr.mxu0 0.0
  %1596 = vmatpush1.msra.mxu0 %v390
  %1597 = vmatprep.subr.mxu0 0.0
  %1598 = vmatpush1.msra.mxu0 %v393
  %1599 = vmatprep.subr.mxu0 0.0
  %1600 = vmatpush1.msra.mxu0 0.0
  %1601 = vmatprep.subr.mxu0 0.0
  %1602 = vmatpush1.msra.mxu0 0.0
  %1603 = vmatprep.subr.mxu0 0.0
  %1604 = vmatpush1.msra.mxu0 0.0
  %1605 = vmatprep.subr.mxu0 0.0
  %1606 = vmatpush1.msra.mxu0 0.0
  %1607 = vmatprep.subr.mxu0 0.0
  %1608 = vmatpush1.msra.mxu0 0.0
  %1609 = vmatprep.subr.mxu0 0.0
  %1610 = vmatpush1.msra.mxu0 0.0
  %1611 = vmatprep.subr.mxu0 0.0
  %1612 = vmatpush1.msra.mxu0 0.0
  %1613 = vmatprep.subr.mxu0 0.0
  %1614 = vmatpush1.msra.mxu0 0.0
  %1615 = vmatprep.subr.mxu0 0.0
  %1616 = vmatpush1.msra.mxu0 0.0
  %1617 = vmatprep.subr.mxu0 0.0
  %1618 = vmatpush1.msra.mxu0 0.0
  %1619 = vmatprep.subr.mxu0 0.0
  %1620 = vmatpush1.msra.mxu0 0.0
  %1621 = vmatprep.subr.mxu0 0.0
  %1622 = vmatpush1.msra.mxu0 0.0
  %1623 = vmatprep.subr.mxu0 0.0
  %1624 = vmatpush1.msra.mxu0 0.0
  %1625 = vmatprep.subr.mxu0 0.0
  %1626 = vmatpush1.msra.mxu0 0.0
  %1627 = vmatprep.subr.mxu0 0.0
  %1628 = vmatpush1.msra.mxu0 0.0
  %1629 = vmatprep.subr.mxu0 0.0
  %1630 = vmatpush1.msra.mxu0 0.0
  %1631 = vmatprep.mubr.f32.mxu0 0.0
  %1632 = vmatmul.mubr.f32.gmra.mrb[0].mxu0 %v1491
  %v1633 = vpop.f32.mrb[0].mxu0
  %v1634 = vadd.f32 0.0, %v1633
  %v1635 = vpop.f32.mrb[0].mxu0
  %1636 = vdwg.mxu0
  %v1637 = vadd.f32 %v1493, %v1563
  %v1638 = vxor.u32 %v1637, 2147483648
  %v1639 = vmul.f32 %v1638, 1.442695
  %v1640 = vpow.pop %v1639
  %v1641 = vadd.f32 %v1640, 1.0
  %v1642 = vrcp.pop %v1641
  %v1643 = vmul.f32 1.0, %v1642
  %v1644 = vadd.f32 %v1494, %v1565
  %v1645 = vxor.u32 %v1644, 2147483648
  %v1646 = vmul.f32 %v1645, 1.442695
  %v1647 = vpow.pop %v1646
  %v1648 = vadd.f32 %v1647, 1.0
  %v1649 = vrcp.pop %v1648
  %v1650 = vmul.f32 1.0, %v1649
  %v1651 = vadd.f32 %v1634, %v399
  %v1652 = vmul.f32 %v1643, %v1651
  %v1653 = vadd.f32 %v1495, %v1652
  %v1654 = vtanh.pop %v1653
  %v1655 = vsub.f32 %v1491, %v1654
  %v1656 = vmul.f32 %v1650, %v1655
  %v1657 = vadd.f32 %v1654, %v1656
  %s1658 = scalar_lea.vmem [#allocation2], 168
  %v1659 = vld [vmem:[%s1658] sm:$0xff]
  %v1660 = vld [vmem:[%s1658 + $0x8] sm:$0xff]
  %v1661 = vld [vmem:[%s1658 + $0x10] sm:$0xff]
  %1662 = vmatprep.subr.mxu0 %v347
  %1663 = vmatpush1.msra.mxu0 %v346
  %1664 = vmatprep.subr.mxu0 %v350
  %1665 = vmatpush1.msra.mxu0 %v349
  %1666 = vmatprep.subr.mxu0 %v353
  %1667 = vmatpush1.msra.mxu0 %v352
  %1668 = vmatprep.subr.mxu0 %v356
  %1669 = vmatpush1.msra.mxu0 %v355
  %1670 = vmatprep.subr.mxu0 %v359
  %1671 = vmatpush1.msra.mxu0 %v358
  %1672 = vmatprep.subr.mxu0 %v362
  %1673 = vmatpush1.msra.mxu0 %v361
  %1674 = vmatprep.subr.mxu0 %v365
  %1675 = vmatpush1.msra.mxu0 %v364
  %1676 = vmatprep.subr.mxu0 %v368
  %1677 = vmatpush1.msra.mxu0 %v367
  %1678 = vmatprep.subr.mxu0 %v371
  %1679 = vmatpush1.msra.mxu0 %v370
  %1680 = vmatprep.subr.mxu0 %v374
  %1681 = vmatpush1.msra.mxu0 %v373
  %1682 = vmatprep.subr.mxu0 %v377
  %1683 = vmatpush1.msra.mxu0 %v376
  %1684 = vmatprep.subr.mxu0 %v380
  %1685 = vmatpush1.msra.mxu0 %v379
  %1686 = vmatprep.subr.mxu0 %v383
  %1687 = vmatpush1.msra.mxu0 %v382
  %1688 = vmatprep.subr.mxu0 %v386
  %1689 = vmatpush1.msra.mxu0 %v385
  %1690 = vmatprep.subr.mxu0 %v389
  %1691 = vmatpush1.msra.mxu0 %v388
  %1692 = vmatprep.subr.mxu0 %v392
  %1693 = vmatpush1.msra.mxu0 %v391
  %1694 = vmatprep.subr.mxu0 0.0
  %1695 = vmatpush1.msra.mxu0 0.0
  %1696 = vmatprep.subr.mxu0 0.0
  %1697 = vmatpush1.msra.mxu0 0.0
  %1698 = vmatprep.subr.mxu0 0.0
  %1699 = vmatpush1.msra.mxu0 0.0
  %1700 = vmatprep.subr.mxu0 0.0
  %1701 = vmatpush1.msra.mxu0 0.0
  %1702 = vmatprep.subr.mxu0 0.0
  %1703 = vmatpush1.msra.mxu0 0.0
  %1704 = vmatprep.subr.mxu0 0.0
  %1705 = vmatpush1.msra.mxu0 0.0
  %1706 = vmatprep.subr.mxu0 0.0
  %1707 = vmatpush1.msra.mxu0 0.0
  %1708 = vmatprep.subr.mxu0 0.0
  %1709 = vmatpush1.msra.mxu0 0.0
  %1710 = vmatprep.subr.mxu0 0.0
  %1711 = vmatpush1.msra.mxu0 0.0
  %1712 = vmatprep.subr.mxu0 0.0
  %1713 = vmatpush1.msra.mxu0 0.0
  %1714 = vmatprep.subr.mxu0 0.0
  %1715 = vmatpush1.msra.mxu0 0.0
  %1716 = vmatprep.subr.mxu0 0.0
  %1717 = vmatpush1.msra.mxu0 0.0
  %1718 = vmatprep.subr.mxu0 0.0
  %1719 = vmatpush1.msra.mxu0 0.0
  %1720 = vmatprep.subr.mxu0 0.0
  %1721 = vmatpush1.msra.mxu0 0.0
  %1722 = vmatprep.subr.mxu0 0.0
  %1723 = vmatpush1.msra.mxu0 0.0
  %1724 = vmatprep.subr.mxu0 0.0
  %1725 = vmatpush1.msra.mxu0 0.0
  %1726 = vmatprep.mubr.f32.mxu0 0.0
  %1727 = vmatmul.mubr.f32.gmra.mrb[0].mxu0 %v1657
  %v1728 = vpop.f32.mrb[0].mxu0
  %v1729 = vadd.f32 0.0, %v1728
  %v1730 = vpop.f32.mrb[0].mxu0
  %v1731 = vadd.f32 0.0, %v1730
  %1732 = vdwg.mxu0
  %1733 = vmatprep.subr.mxu0 0.0
  %1734 = vmatpush1.msra.mxu0 %v348
  %1735 = vmatprep.subr.mxu0 0.0
  %1736 = vmatpush1.msra.mxu0 %v351
  %1737 = vmatprep.subr.mxu0 0.0
  %1738 = vmatpush1.msra.mxu0 %v354
  %1739 = vmatprep.subr.mxu0 0.0
  %1740 = vmatpush1.msra.mxu0 %v357
  %1741 = vmatprep.subr.mxu0 0.0
  %1742 = vmatpush1.msra.mxu0 %v360
  %1743 = vmatprep.subr.mxu0 0.0
  %1744 = vmatpush1.msra.mxu0 %v363
  %1745 = vmatprep.subr.mxu0 0.0
  %1746 = vmatpush1.msra.mxu0 %v366
  %1747 = vmatprep.subr.mxu0 0.0
  %1748 = vmatpush1.msra.mxu0 %v369
  %1749 = vmatprep.subr.mxu0 0.0
  %1750 = vmatpush1.msra.mxu0 %v372
  %1751 = vmatprep.subr.mxu0 0.0
  %1752 = vmatpush1.msra.mxu0 %v375
  %1753 = vmatprep.subr.mxu0 0.0
  %1754 = vmatpush1.msra.mxu0 %v378
  %1755 = vmatprep.subr.mxu0 0.0
  %1756 = vmatpush1.msra.mxu0 %v381
  %1757 = vmatprep.subr.mxu0 0.0
  %1758 = vmatpush1.msra.mxu0 %v384
  %1759 = vmatprep.subr.mxu0 0.0
  %1760 = vmatpush1.msra.mxu0 %v387
  %1761 = vmatprep.subr.mxu0 0.0
  %1762 = vmatpush1.msra.mxu0 %v390
  %1763 = vmatprep.subr.mxu0 0.0
  %1764 = vmatpush1.msra.mxu0 %v393
  %1765 = vmatprep.subr.mxu0 0.0
  %1766 = vmatpush1.msra.mxu0 0.0
  %1767 = vmatprep.subr.mxu0 0.0
  %1768 = vmatpush1.msra.mxu0 0.0
  %1769 = vmatprep.subr.mxu0 0.0
  %1770 = vmatpush1.msra.mxu0 0.0
  %1771 = vmatprep.subr.mxu0 0.0
  %1772 = vmatpush1.msra.mxu0 0.0
  %1773 = vmatprep.subr.mxu0 0.0
  %1774 = vmatpush1.msra.mxu0 0.0
  %1775 = vmatprep.subr.mxu0 0.0
  %1776 = vmatpush1.msra.mxu0 0.0
  %1777 = vmatprep.subr.mxu0 0.0
  %1778 = vmatpush1.msra.mxu0 0.0
  %1779 = vmatprep.subr.mxu0 0.0
  %1780 = vmatpush1.msra.mxu0 0.0
  %1781 = vmatprep.subr.mxu0 0.0
  %1782 = vmatpush1.msra.mxu0 0.0
  %1783 = vmatprep.subr.mxu0 0.0
  %1784 = vmatpush1.msra.mxu0 0.0
  %1785 = vmatprep.subr.mxu0 0.0
  %1786 = vmatpush1.msra.mxu0 0.0
  %1787 = vmatprep.subr.mxu0 0.0
  %1788 = vmatpush1.msra.mxu0 0.0
  %1789 = vmatprep.subr.mxu0 0.0
  %1790 = vmatpush1.msra.mxu0 0.0
  %1791 = vmatprep.subr.mxu0 0.0
  %1792 = vmatpush1.msra.mxu0 0.0
  %1793 = vmatprep.subr.mxu0 0.0
  %1794 = vmatpush1.msra.mxu0 0.0
  %1795 = vmatprep.subr.mxu0 0.0
  %1796 = vmatpush1.msra.mxu0 0.0
  %1797 = vmatprep.mubr.f32.mxu0 0.0
  %1798 = vmatmul.mubr.f32.gmra.mrb[0].mxu0 %v1657
  %v1799 = vpop.f32.mrb[0].mxu0
  %v1800 = vadd.f32 0.0, %v1799
  %v1801 = vpop.f32.mrb[0].mxu0
  %1802 = vdwg.mxu0
  %v1803 = vadd.f32 %v1659, %v1729
  %v1804 = vxor.u32 %v1803, 2147483648
  %v1805 = vmul.f32 %v1804, 1.442695
  %v1806 = vpow.pop %v1805
  %v1807 = vadd.f32 %v1806, 1.0
  %v1808 = vrcp.pop %v1807
  %v1809 = vmul.f32 1.0, %v1808
  %v1810 = vadd.f32 %v1660, %v1731
  %v1811 = vxor.u32 %v1810, 2147483648
  %v1812 = vmul.f32 %v1811, 1.442695
  %v1813 = vpow.pop %v1812
  %v1814 = vadd.f32 %v1813, 1.0
  %v1815 = vrcp.pop %v1814
  %v1816 = vmul.f32 1.0, %v1815
  %v1817 = vadd.f32 %v1800, %v399
  %v1818 = vmul.f32 %v1809, %v1817
  %v1819 = vadd.f32 %v1661, %v1818
  %v1820 = vtanh.pop %v1819
  %v1821 = vsub.f32 %v1657, %v1820
  %v1822 = vmul.f32 %v1816, %v1821
  %v1823 = vadd.f32 %v1820, %v1822
  %1824 = vst [vmem:[%s9] sm:$0xff] %v1823
  // Predicated region
  $region34: #{gru_core_forward.1} parent=0 // pred_check
    _
  $region35: #{gru_core_forward.1} parent=0 // pred_check_branch
    %1826 = sbr.rel (0) target = $region37
  $region36: #{gru_core_forward.1} parent=0 // pred_region
    _
  $region37: #{gru_core_forward.1} parent=0 // pred_fallthru
    _
  // Predicated region
  $region38: #{gru_core_forward.1} parent=0 // pred_check
    _
  $region39: #{gru_core_forward.1} parent=0 // pred_check_branch
    %1828 = sbr.rel (0) target = $region41
  $region40: #{gru_core_forward.1} parent=0 // pred_region
    _
  $region41: #{gru_core_forward.1} parent=0 // pred_fallthru
    _
  // Predicated region
  $region42: #{gru_core_forward.1} parent=0 // pred_check
    _
  $region43: #{gru_core_forward.1} parent=0 // pred_check_branch
    %1830 = sbr.rel (0) target = $region45
  $region44: #{gru_core_forward.1} parent=0 // pred_region
    _
  $region45: #{gru_core_forward.1} parent=0 // pred_fallthru
    _
  // Predicated region
  $region46: #{gru_core_forward.1} parent=0 // pred_check
    _
  $region47: #{gru_core_forward.1} parent=0 // pred_check_branch
    %1832 = sbr.rel (0) target = $region49
  $region48: #{gru_core_forward.1} parent=0 // pred_region
    _
  $region49: #{gru_core_forward.1} parent=0 // pred_fallthru
    _

</llo_original>
